<compile_context>
chip_gen: v5e
topology: v5e:2x2
jax: 0.10.0
libtpu: 0.0.40
codegen_flags: <defaults>
</compile_context>

<pallas_src>
import functools

import jax
import jax.numpy as jnp
import numpy as np
from jax import lax
from jax.experimental import pallas as pl
from jax.experimental.pallas import tpu as pltpu

# ---------------------------------------------------------------------------
# Model dimensions (small, consistent with the module's structure)
# ---------------------------------------------------------------------------
NODE_FEAT_DIM = 16      # atom / motif-node feature dim
NODE_HIDDEN_DIM = 32    # GNN node hidden dim
MOL_REPR_DIM = 32       # params['mol_repr_dim']
MLP_HIDDEN_DIM = 32     # hidden width of the selection MLPs
MOTIF_VOCAB_SIZE = 16   # SelectMotifMlp output size
NUM_BOND_TYPES = 4      # UNSPECIFIED / SINGLE / DOUBLE / TRIPLE
GNN_STEPS = 3           # message-passing iterations

SEL_ROWS = 8            # rows in the selection output slab (5 used)
SEL_LANES = 128         # lane-dense selection output (unmasked stores)

_VMEM_SPEC = pl.BlockSpec(memory_space=pltpu.MemorySpace.VMEM)

# ---------------------------------------------------------------------------
# Packed weight slab layout  (name -> (row_offset, in_dim, out_dim))
# All weights stored row-major, padded to 32 lanes; biases as single rows at
# the end of the same slab (one DMA for the whole parameter set).
# ---------------------------------------------------------------------------
_F, _H, _R = NODE_FEAT_DIM, NODE_HIDDEN_DIM, MOL_REPR_DIM
_MH, _V, _B = MLP_HIDDEN_DIM, MOTIF_VOCAB_SIZE, NUM_BOND_TYPES

_W_LAYOUT = [
    ('em_w_in',  _F,    _H),
    ('em_w_msg', _H,    _H),
    ('em_w_out', _H,    _R),
    ('eg_w_in',  _F,    _H),
    ('eg_w_msg', _H,    _H),
    ('sm_w1',    2 * _R, _MH),   # [w1p ; w1r] stacked
    ('sm_w2',    _MH,   _V),
    ('sc_w1n',   _H,    _MH),
    ('sc_w1m',   _R,    _MH),
    ('sc_w2',    _MH,   1),
    ('a1_w1n',   _H,    _MH),
    ('a1_w1ot',  _R,    _MH),    # w1o + w1t pre-summed (both multiply r_mr)
    ('a1_w2',    _MH,   1),
    ('a2_w1n',   _H,    _MH),
    ('a2_w1pr',  2 * _R, _MH),   # [w1o ; w1t] stacked (applied to [p_mr|r_mr])
    ('a2_w2',    _MH,   1),
    ('bt_w1c1',  _H,    _MH),
    ('bt_w1c2',  _H,    _MH),
    ('bt_w1t',   _R,    _MH),
    ('bt_w2',    _MH,   _B),
]

_W_OFFSETS = {}
_row = 0
for _name, _din, _dout in _W_LAYOUT:
    _W_OFFSETS[_name] = (_row, _din, _dout)
    _row += _din
_B_BASE = _row

_B_NAMES = ['em_b_in', 'em_b_msg', 'em_b_out', 'eg_b_in', 'eg_b_msg',
            'sm_b1', 'sm_b2', 'sc_b1', 'sc_b2', 'a1_b1', 'a1_b2',
            'a2_b1', 'a2_b2', 'bt_b1', 'bt_b2']
_B_INDEX = {n: i for i, n in enumerate(_B_NAMES)}


def _round_up(x, m):
    return (x + m - 1) // m * m


_N_BIAS_ROWS = _round_up(len(_B_NAMES), 8)
W_SLAB_ROWS = _B_BASE + _N_BIAS_ROWS       # 688
W_SLAB_COLS = 32


# ---------------------------------------------------------------------------
# In-kernel helpers (all vectorized — no scalar extraction, no dynamic slices)
# ---------------------------------------------------------------------------
def _relu(x):
    return jnp.maximum(x, 0.0)


def _argmax_lane(x):
    """First-argmax along the last (lane) axis of a (1, K) array -> (1, 1) f32."""
    k = x.shape[-1]
    idx = lax.broadcasted_iota(jnp.int32, x.shape, 1).astype(jnp.float32)
    m = jnp.max(x, axis=-1, keepdims=True)
    cand = jnp.where(x >= m, idx, float(k))
    return jnp.min(cand, axis=-1, keepdims=True)


def _argmax_sublane(x):
    """First-argmax along the first (sublane) axis of a (N, 1) array -> (1, 1) f32."""
    n = x.shape[0]
    idx = lax.broadcasted_iota(jnp.int32, x.shape, 0).astype(jnp.float32)
    m = jnp.max(x, axis=0, keepdims=True)
    cand = jnp.where(x >= m, idx, float(n))
    return jnp.min(cand, axis=0, keepdims=True)


def _select_row(h, idx11):
    """h[idx] as a (1, H) row via a one-hot masked sum (no dynamic slicing)."""
    rows = lax.broadcasted_iota(jnp.int32, (h.shape[0], 1), 0)
    mask = rows == idx11.astype(jnp.int32)
    return jnp.sum(jnp.where(mask, h, 0.0), axis=0, keepdims=True)


def _dot(a, b):
    return jnp.dot(a, b, preferred_element_type=jnp.float32)


# ---------------------------------------------------------------------------
# Fused Molgena inference kernel (two inputs: graph slab + parameter slab)
# ---------------------------------------------------------------------------
def _molgena_fused_kernel(graphs_ref, w_ref, sel_ref, molreprs_ref, *,
                          n_steps, n_atoms, n_clusters):
    N, Nc = n_atoms, n_clusters
    F, H, R = NODE_FEAT_DIM, NODE_HIDDEN_DIM, MOL_REPR_DIM

    # ---- static-sliced parameter views (zero runtime indexing cost) --------
    def w(name):
        off, din, dout = _W_OFFSETS[name]
        return w_ref[off:off + din, :dout]

    bias_blk = w_ref[_B_BASE:_B_BASE + _N_BIAS_ROWS, :]   # one aligned load

    def b(name, dout):
        i = _B_INDEX[name]
        return bias_blk[i:i + 1, :dout]

    # ---- packed graph data --------------------------------------------------
    mols_x = graphs_ref[0:2 * N, 0:F]                    # (2N, F) stacked pmol|rmol
    adj_bd = graphs_ref[0:2 * N, F:F + 2 * N]            # (2N, 2N) block-diagonal
    mg_x = graphs_ref[2 * N:2 * N + Nc, 0:F]             # (Nc, F)
    mg_adj = graphs_ref[2 * N:2 * N + Nc, F:F + Nc]      # (Nc, Nc)
    motif_mrepr = graphs_ref[2 * N + Nc:2 * N + Nc + 1, 0:R]   # (1, R)

    # ---- GNN (weights/biases read once, reused across unrolled steps) -------
    def gnn(x, adj, w_in, b_in, w_msg, b_msg):
        h = _relu(_dot(x, w_in) + b_in)
        for _ in range(n_steps):      # static unroll (tiny N)
            h = _relu(_dot(_dot(adj, h), w_msg) + b_msg + h)
        return h

    em_w_in, em_b_in = w('em_w_in'), b('em_b_in', H)
    em_w_msg, em_b_msg = w('em_w_msg'), b('em_b_msg', H)
    em_w_out, em_b_out = w('em_w_out'), b('em_b_out', R)
    eg_w_in, eg_b_in = w('eg_w_in'), b('eg_b_in', H)
    eg_w_msg, eg_b_msg = w('eg_w_msg'), b('eg_b_msg', H)

    # --- EncodeMol: pmol + rmol in ONE pass (block-diag adjacency) ----------
    h2 = gnn(mols_x, adj_bd, em_w_in, em_b_in, em_w_msg, em_b_msg)   # (2N, H)

    # per-molecule mean pooling as one (2, 2N) matmul
    rows2 = lax.broadcasted_iota(jnp.int32, (2, 2 * N), 0)
    cols2 = lax.broadcasted_iota(jnp.int32, (2, 2 * N), 1)
    pool = jnp.where((cols2 >= N).astype(jnp.int32) == rows2, 1.0 / N, 0.0)
    molreprs = jnp.tanh(_dot(_dot(pool, h2), em_w_out) + em_b_out)    # (2, R)

    p_mr = molreprs[0:1, :]
    r_mr = molreprs[1:2, :]
    p_h = h2[0:N, :]
    r_h = h2[N:2 * N, :]
    pr = jnp.concatenate([p_mr, r_mr], axis=1)                        # (1, 2R)

    # --- EncodeMGraph node hiddens (mgraph mol repr is never used) ----------
    g_h = gnn(mg_x, mg_adj, eg_w_in, eg_b_in, eg_w_msg, eg_b_msg)     # (Nc, H)

    # --- SelectMotifMlp: argmax(softmax(x)) == argmax(x) --------------------
    h1 = _relu(_dot(pr, w('sm_w1')) + b('sm_b1', MLP_HIDDEN_DIM))
    motif_logits = _dot(h1, w('sm_w2')) + b('sm_b2', MOTIF_VOCAB_SIZE)
    motif_idx = _argmax_lane(motif_logits)

    # --- SelectAttachmentClusters --------------------------------------------
    # TODO(synk): PyTorch samples dist.Categorical(probs); deterministic argmax used.
    h1 = _relu(_dot(g_h, w('sc_w1n')) + _dot(motif_mrepr, w('sc_w1m'))
               + b('sc_b1', MLP_HIDDEN_DIM))
    cl_logits = _dot(h1, w('sc_w2')) + b('sc_b2', 1)
    cluster_idx = _argmax_sublane(cl_logits)

    # --- SelectAttachmentAtom (cluster1): nodes=pmol, other=target=rmol ------
    h1 = _relu(_dot(p_h, w('a1_w1n')) + _dot(r_mr, w('a1_w1ot'))
               + b('a1_b1', MLP_HIDDEN_DIM))
    c1_idx = _argmax_sublane(_dot(h1, w('a1_w2')) + b('a1_b2', 1))

    # --- SelectAttachmentAtom (cluster2): nodes=rmol, other=pmol, target=rmol
    h1 = _relu(_dot(r_h, w('a2_w1n')) + _dot(pr, w('a2_w1pr'))
               + b('a2_b1', MLP_HIDDEN_DIM))
    c2_idx = _argmax_sublane(_dot(h1, w('a2_w2')) + b('a2_b2', 1))

    # --- SelectAttachmentBondType on the chosen atoms' hiddens ---------------
    c1_h = _select_row(p_h, c1_idx)                                   # (1, H)
    c2_h = _select_row(r_h, c2_idx)                                   # (1, H)
    h1 = _relu(_dot(c1_h, w('bt_w1c1')) + _dot(c2_h, w('bt_w1c2'))
               + _dot(r_mr, w('bt_w1t')) + b('bt_b1', MLP_HIDDEN_DIM))
    bt_logits = _dot(h1, w('bt_w2')) + b('bt_b2', NUM_BOND_TYPES)
    bond_idx = _argmax_lane(bt_logits)

    # --- Outputs: one full store each ----------------------------------------
    molreprs_ref[...] = molreprs                                      # (2, R)

    row_ids = lax.broadcasted_iota(jnp.int32, (SEL_ROWS, SEL_LANES), 0)
    slab = jnp.zeros((SEL_ROWS, SEL_LANES), jnp.float32)
    for i, v in enumerate([motif_idx, cluster_idx, c1_idx, c2_idx, bond_idx]):
        slab = jnp.where(row_ids == i,
                         jnp.broadcast_to(v, (SEL_ROWS, SEL_LANES)), slab)
    sel_ref[...] = slab.astype(jnp.int32)                             # (8, 128)


# ---------------------------------------------------------------------------
# Wrapper: one pallas_call, two DMA inputs (graph slab + parameter slab)
# ---------------------------------------------------------------------------
def molgena_infer(pmol_x, pmol_adj, rmol_x, rmol_adj,
                  mgraph_x, mgraph_adj, motif_mrepr, packed_w):
    # TODO(synk): pmol / rmol must share node count to stack; pad + node-mask otherwise.
    N = pmol_x.shape[0]
    Nc = mgraph_x.shape[0]
    F = pmol_x.shape[1]
    R = MOL_REPR_DIM
    assert rmol_x.shape[0] == N

    g_cols = max(F + 2 * N, F + Nc, R)
    g_rows = _round_up(2 * N + Nc + 1, 8)
    f32 = jnp.float32

    # block-diagonal adjacency for the batched two-molecule GNN pass
    zNN = jnp.zeros((N, N), f32)
    adj_bd = jnp.concatenate(
        [jnp.concatenate([pmol_adj, zNN], axis=1),
         jnp.concatenate([zNN, rmol_adj], axis=1)], axis=0)           # (2N, 2N)
    mols_x = jnp.concatenate([pmol_x, rmol_x], axis=0)                # (2N, F)

    top = jnp.concatenate([mols_x, adj_bd], axis=1)                   # (2N, F+2N)
    top = jnp.pad(top, ((0, 0), (0, g_cols - top.shape[1])))
    mid = jnp.concatenate([mgraph_x, mgraph_adj], axis=1)             # (Nc, F+Nc)
    mid = jnp.pad(mid, ((0, 0), (0, g_cols - mid.shape[1])))
    bot = jnp.zeros((g_rows - 2 * N - Nc, g_cols), f32)
    bot = bot.at[0, :R].set(motif_mrepr)
    graphs = jnp.concatenate([top, mid, bot], axis=0)                 # (g_rows, g_cols)

    sel, molreprs = pl.pallas_call(
        functools.partial(_molgena_fused_kernel, n_steps=GNN_STEPS,
                          n_atoms=N, n_clusters=Nc),
        out_shape=(
            jax.ShapeDtypeStruct((SEL_ROWS, SEL_LANES), jnp.int32),
            jax.ShapeDtypeStruct((2, MOL_REPR_DIM), jnp.float32),
        ),
        in_specs=[_VMEM_SPEC, _VMEM_SPEC],
        out_specs=(_VMEM_SPEC, _VMEM_SPEC),
    )(graphs, packed_w)
    return sel, molreprs


# ---------------------------------------------------------------------------
# Parameter init (nested dict, faithful to the module structure) + host packer
# ---------------------------------------------------------------------------
def _init_linear(key, in_dim, out_dim, scale=0.1):
    kw, kb = jax.random.split(key)
    w = scale * jax.random.normal(kw, (in_dim, out_dim), jnp.float32)
    b = scale * jax.random.normal(kb, (1, out_dim), jnp.float32)
    return w, b


def _init_encoder(key):
    k1, k2, k3 = jax.random.split(key, 3)
    w_in, b_in = _init_linear(k1, NODE_FEAT_DIM, NODE_HIDDEN_DIM)
    w_msg, b_msg = _init_linear(k2, NODE_HIDDEN_DIM, NODE_HIDDEN_DIM)
    w_out, b_out = _init_linear(k3, NODE_HIDDEN_DIM, MOL_REPR_DIM)
    return dict(w_in=w_in, b_in=b_in, w_msg=w_msg, b_msg=b_msg,
                w_out=w_out, b_out=b_out)


def _init_mlp2_split(key, blocks, hidden_dim, out_dim):
    """2-layer MLP; W1 stored per concatenated-input block (same math as
    concat([...]) @ W1 split into block matmuls)."""
    keys = jax.random.split(key, len(blocks) + 2)
    p = {}
    for k, (name, d) in zip(keys[:len(blocks)], blocks):
        p[name] = 0.1 * jax.random.normal(k, (d, hidden_dim), jnp.float32)
    p['b1'] = 0.1 * jax.random.normal(keys[-2], (1, hidden_dim), jnp.float32)
    p['w2'], p['b2'] = _init_linear(keys[-1], hidden_dim, out_dim)
    return p


def init_molgena_params(seed=42):
    keys = jax.random.split(jax.random.PRNGKey(seed), 7)
    H, R = NODE_HIDDEN_DIM, MOL_REPR_DIM
    return {
        'encode_mol': _init_encoder(keys[0]),
        'encode_mgraph': _init_encoder(keys[1]),
        'select_motif_mlp': _init_mlp2_split(
            keys[2], [('w1p', R), ('w1r', R)], MLP_HIDDEN_DIM, MOTIF_VOCAB_SIZE),
        'select_attachment_clusters': _init_mlp2_split(
            keys[3], [('w1n', H), ('w1m', R)], MLP_HIDDEN_DIM, 1),
        'select_attachment_cluster1_atom': _init_mlp2_split(
            keys[4], [('w1n', H), ('w1o', R), ('w1t', R)], MLP_HIDDEN_DIM, 1),
        'select_attachment_cluster2_atom': _init_mlp2_split(
            keys[5], [('w1n', H), ('w1o', R), ('w1t', R)], MLP_HIDDEN_DIM, 1),
        'select_attachment_bond_type': _init_mlp2_split(
            keys[6], [('w1c1', H), ('w1c2', H), ('w1t', R)], MLP_HIDDEN_DIM,
            NUM_BOND_TYPES),
    }


def pack_weights(params):
    """Build the single (W_SLAB_ROWS, 32) f32 parameter slab (done ONCE, host)."""
    em, eg = params['encode_mol'], params['encode_mgraph']
    sm = params['select_motif_mlp']
    sc = params['select_attachment_clusters']
    a1 = params['select_attachment_cluster1_atom']
    a2 = params['select_attachment_cluster2_atom']
    bt = params['select_attachment_bond_type']

    mats = {
        'em_w_in': em['w_in'], 'em_w_msg': em['w_msg'], 'em_w_out': em['w_out'],
        'eg_w_in': eg['w_in'], 'eg_w_msg': eg['w_msg'],
        'sm_w1': jnp.concatenate([sm['w1p'], sm['w1r']], axis=0),
        'sm_w2': sm['w2'],
        'sc_w1n': sc['w1n'], 'sc_w1m': sc['w1m'], 'sc_w2': sc['w2'],
        'a1_w1n': a1['w1n'], 'a1_w1ot': a1['w1o'] + a1['w1t'], 'a1_w2': a1['w2'],
        'a2_w1n': a2['w1n'],
        'a2_w1pr': jnp.concatenate([a2['w1o'], a2['w1t']], axis=0),
        'a2_w2': a2['w2'],
        'bt_w1c1': bt['w1c1'], 'bt_w1c2': bt['w1c2'], 'bt_w1t': bt['w1t'],
        'bt_w2': bt['w2'],
    }
    biases = {
        'em_b_in': em['b_in'], 'em_b_msg': em['b_msg'], 'em_b_out': em['b_out'],
        'eg_b_in': eg['b_in'], 'eg_b_msg': eg['b_msg'],
        'sm_b1': sm['b1'], 'sm_b2': sm['b2'],
        'sc_b1': sc['b1'], 'sc_b2': sc['b2'],
        'a1_b1': a1['b1'], 'a1_b2': a1['b2'],
        'a2_b1': a2['b1'], 'a2_b2': a2['b2'],
        'bt_b1': bt['b1'], 'bt_b2': bt['b2'],
    }

    slab = np.zeros((W_SLAB_ROWS, W_SLAB_COLS), np.float32)
    for name, (off, din, dout) in _W_OFFSETS.items():
        m = np.asarray(mats[name], np.float32)
        assert m.shape == (din, dout), (name, m.shape, (din, dout))
        slab[off:off + din, :dout] = m
    for name, i in _B_INDEX.items():
        v = np.asarray(biases[name], np.float32).reshape(-1)
        slab[_B_BASE + i, :v.shape[0]] = v
    return jnp.asarray(slab)


# ---------------------------------------------------------------------------
# Pure-JAX reference (faithful to the module; used for correctness check only)
# ---------------------------------------------------------------------------
def _reference_infer(pmol_x, pmol_adj, rmol_x, rmol_adj,
                     mgraph_x, mgraph_adj, motif_mrepr, params):
    relu = lambda x: jnp.maximum(x, 0.0)

    def enc(x, adj, p):
        h = relu(x @ p['w_in'] + p['b_in'])
        for _ in range(GNN_STEPS):
            h = relu((adj @ h) @ p['w_msg'] + p['b_msg'] + h)
        mr = jnp.tanh(jnp.mean(h, axis=0, keepdims=True) @ p['w_out'] + p['b_out'])
        return h, mr

    p_h, p_mr = enc(pmol_x, pmol_adj, params['encode_mol'])
    r_h, r_mr = enc(rmol_x, rmol_adj, params['encode_mol'])
    g_h, _ = enc(mgraph_x, mgraph_adj, params['encode_mgraph'])

    sm = params['select_motif_mlp']
    logits = relu(p_mr @ sm['w1p'] + r_mr @ sm['w1r'] + sm['b1']) @ sm['w2'] + sm['b2']
    motif = int(jnp.argmax(jax.nn.softmax(logits, axis=-1), axis=1)[0])

    sc = params['select_attachment_clusters']
    m = motif_mrepr[None, :]
    logits = relu(g_h @ sc['w1n'] + m @ sc['w1m'] + sc['b1']) @ sc['w2'] + sc['b2']
    cluster = int(jnp.argmax(jax.nn.softmax(logits, axis=0)[:, 0]))

    a1 = params['select_attachment_cluster1_atom']
    logits = relu(p_h @ a1['w1n'] + r_mr @ a1['w1o'] + r_mr @ a1['w1t']
                  + a1['b1']) @ a1['w2'] + a1['b2']
    c1 = int(jnp.argmax(jax.nn.softmax(logits, axis=0)[:, 0]))

    a2 = params['select_attachment_cluster2_atom']
    logits = relu(r_h @ a2['w1n'] + p_mr @ a2['w1o'] + r_mr @ a2['w1t']
                  + a2['b1']) @ a2['w2'] + a2['b2']
    c2 = int(jnp.argmax(jax.nn.softmax(logits, axis=0)[:, 0]))

    bt = params['select_attachment_bond_type']
    c1_h, c2_h = p_h[c1][None, :], r_h[c2][None, :]
    logits = relu(c1_h @ bt['w1c1'] + c2_h @ bt['w1c2'] + r_mr @ bt['w1t']
                  + bt['b1']) @ bt['w2'] + bt['b2']
    bond = int(jnp.argmax(jax.nn.softmax(logits, axis=-1), axis=1)[0])

    return (motif, cluster, c1, c2, bond), jnp.concatenate([p_mr, r_mr], axis=0)


# ---------------------------------------------------------------------------
# Demo / self-test
# ---------------------------------------------------------------------------
if __name__ == "__main__":
    params = init_molgena_params()
    packed_w = pack_weights(params)          # one-time host packing (one DMA slab)

    key = jax.random.PRNGKey(0)
    k_pn, k_pa, k_rn, k_ra, k_mn, k_ma, k_motif = jax.random.split(key, 7)

    N_ATOMS = 8      # atoms in the partial / reconstruction molecules
    N_CLUSTERS = 8   # motif-graph nodes of the partial molecule

    def make_graph(kn, ka, n):
        feats = jax.random.normal(kn, (n, NODE_FEAT_DIM), jnp.float32)
        a = (jax.random.uniform(ka, (n, n)) > 0.5).astype(jnp.float32)
        a = jnp.maximum(a, a.T) * (1.0 - jnp.eye(n, dtype=jnp.float32))
        return feats, a

    pmol_x, pmol_adj = make_graph(k_pn, k_pa, N_ATOMS)
    rmol_x, rmol_adj = make_graph(k_rn, k_ra, N_ATOMS)
    mgraph_x, mgraph_adj = make_graph(k_mn, k_ma, N_CLUSTERS)
    motif_mrepr = jax.random.normal(k_motif, (MOL_REPR_DIM,), jnp.float32)

    fused = jax.jit(molgena_infer)
    sel_out, molreprs = fused(pmol_x, pmol_adj, rmol_x, rmol_adj,
                              mgraph_x, mgraph_adj, motif_mrepr, packed_w)
    jax.block_until_ready((sel_out, molreprs))

    # Single host sync at the very end of the pipeline.
    sel = jax.device_get(sel_out[:, 0])
    motif_idx, cluster_idx, c1_atom, c2_atom, bond_type = (int(v) for v in sel[:5])

    # Pure-JAX reference check.
    ref_sel, ref_reprs = _reference_infer(pmol_x, pmol_adj, rmol_x, rmol_adj,
                                          mgraph_x, mgraph_adj, motif_mrepr,
                                          params)
    assert (motif_idx, cluster_idx, c1_atom, c2_atom, bond_type) == ref_sel, (
        (motif_idx, cluster_idx, c1_atom, c2_atom, bond_type), ref_sel)
    assert jnp.allclose(molreprs, ref_reprs, atol=1e-4, rtol=1e-4)

    assert 0 <= motif_idx < MOTIF_VOCAB_SIZE
    assert 0 <= cluster_idx < N_CLUSTERS
    assert 0 <= c1_atom < N_ATOMS and 0 <= c2_atom < N_ATOMS
    assert 0 <= bond_type < NUM_BOND_TYPES
    print("KERNEL_OK")
</pallas_src>

<mosaic_0001>
module attributes {stable_mosaic.version = 11 : i64} {
  func.func @_molgena_fused_kernel(%arg0: memref<32x32xf32, #tpu.memory_space<vmem>>, %arg1: memref<688x32xf32, #tpu.memory_space<vmem>>, %arg2: memref<8x128xi32, #tpu.memory_space<vmem>>, %arg3: memref<2x32xf32, #tpu.memory_space<vmem>>) attributes {dimension_semantics = [], scalar_prefetch = 0 : i64, scratch_operands = 0 : i64, tpu.core_type = #tpu.core_type<tc>} {
    %c672 = arith.constant 672 : index
    %c0 = arith.constant 0 : index
    %0 = vector.load %arg1[%c672, %c0] : memref<688x32xf32, #tpu.memory_space<vmem>>, vector<16x32xf32>
    %c0_0 = arith.constant 0 : index
    %c0_1 = arith.constant 0 : index
    %1 = vector.load %arg0[%c0_0, %c0_1] : memref<32x32xf32, #tpu.memory_space<vmem>>, vector<16x16xf32>
    %c0_2 = arith.constant 0 : index
    %c16 = arith.constant 16 : index
    %2 = vector.load %arg0[%c0_2, %c16] : memref<32x32xf32, #tpu.memory_space<vmem>>, vector<16x16xf32>
    %c16_3 = arith.constant 16 : index
    %c0_4 = arith.constant 0 : index
    %3 = vector.load %arg0[%c16_3, %c0_4] : memref<32x32xf32, #tpu.memory_space<vmem>>, vector<8x16xf32>
    %c16_5 = arith.constant 16 : index
    %c16_6 = arith.constant 16 : index
    %4 = vector.load %arg0[%c16_5, %c16_6] : memref<32x32xf32, #tpu.memory_space<vmem>>, vector<8x8xf32>
    %c24 = arith.constant 24 : index
    %c0_7 = arith.constant 0 : index
    %5 = vector.load %arg0[%c24, %c0_7] : memref<32x32xf32, #tpu.memory_space<vmem>>, vector<1x32xf32>
    %c0_8 = arith.constant 0 : index
    %c0_9 = arith.constant 0 : index
    %6 = vector.load %arg1[%c0_8, %c0_9] : memref<688x32xf32, #tpu.memory_space<vmem>>, vector<16x32xf32>
    %7 = vector.extract_strided_slice %0 {offsets = [0, 0], sizes = [1, 32], strides = [1, 1]} : vector<16x32xf32> to vector<1x32xf32>
    %c16_10 = arith.constant 16 : index
    %c0_11 = arith.constant 0 : index
    %8 = vector.load %arg1[%c16_10, %c0_11] : memref<688x32xf32, #tpu.memory_space<vmem>>, vector<32x32xf32>
    %9 = vector.extract_strided_slice %0 {offsets = [1, 0], sizes = [1, 32], strides = [1, 1]} : vector<16x32xf32> to vector<1x32xf32>
    %c48 = arith.constant 48 : index
    %c0_12 = arith.constant 0 : index
    %10 = vector.load %arg1[%c48, %c0_12] : memref<688x32xf32, #tpu.memory_space<vmem>>, vector<32x32xf32>
    %11 = vector.extract_strided_slice %0 {offsets = [2, 0], sizes = [1, 32], strides = [1, 1]} : vector<16x32xf32> to vector<1x32xf32>
    %c80 = arith.constant 80 : index
    %c0_13 = arith.constant 0 : index
    %12 = vector.load %arg1[%c80, %c0_13] : memref<688x32xf32, #tpu.memory_space<vmem>>, vector<16x32xf32>
    %13 = vector.extract_strided_slice %0 {offsets = [3, 0], sizes = [1, 32], strides = [1, 1]} : vector<16x32xf32> to vector<1x32xf32>
    %c96 = arith.constant 96 : index
    %c0_14 = arith.constant 0 : index
    %14 = vector.load %arg1[%c96, %c0_14] : memref<688x32xf32, #tpu.memory_space<vmem>>, vector<32x32xf32>
    %15 = vector.extract_strided_slice %0 {offsets = [4, 0], sizes = [1, 32], strides = [1, 1]} : vector<16x32xf32> to vector<1x32xf32>
    %cst = arith.constant dense<0.000000e+00> : vector<16x32xf32>
    %16 = tpu.matmul %1, %6, %cst {dimension_numbers = #tpu.dot_dimension_numbers<[1], [0], [0], [1], [0, 0, 1, 1], [], []>} : vector<16x16xf32>, vector<16x32xf32>, vector<16x32xf32> -> vector<16x32xf32>
    %17 = vector.broadcast %7 : vector<1x32xf32> to vector<16x32xf32>
    %18 = arith.addf %16, %17 : vector<16x32xf32>
    %cst_15 = arith.constant 0.000000e+00 : f32
    %19 = vector.broadcast %cst_15 : f32 to vector<16x32xf32>
    %20 = arith.maximumf %18, %19 : vector<16x32xf32>
    %cst_16 = arith.constant dense<0.000000e+00> : vector<16x32xf32>
    %21 = tpu.matmul %2, %20, %cst_16 {dimension_numbers = #tpu.dot_dimension_numbers<[1], [0], [0], [1], [0, 0, 1, 1], [], []>} : vector<16x16xf32>, vector<16x32xf32>, vector<16x32xf32> -> vector<16x32xf32>
    %cst_17 = arith.constant dense<0.000000e+00> : vector<16x32xf32>
    %22 = tpu.matmul %21, %8, %cst_17 {dimension_numbers = #tpu.dot_dimension_numbers<[1], [0], [0], [1], [0, 0, 1, 1], [], []>} : vector<16x32xf32>, vector<32x32xf32>, vector<16x32xf32> -> vector<16x32xf32>
    %23 = vector.broadcast %9 : vector<1x32xf32> to vector<16x32xf32>
    %24 = arith.addf %22, %23 : vector<16x32xf32>
    %25 = arith.addf %24, %20 : vector<16x32xf32>
    %cst_18 = arith.constant 0.000000e+00 : f32
    %26 = vector.broadcast %cst_18 : f32 to vector<16x32xf32>
    %27 = arith.maximumf %25, %26 : vector<16x32xf32>
    %cst_19 = arith.constant dense<0.000000e+00> : vector<16x32xf32>
    %28 = tpu.matmul %2, %27, %cst_19 {dimension_numbers = #tpu.dot_dimension_numbers<[1], [0], [0], [1], [0, 0, 1, 1], [], []>} : vector<16x16xf32>, vector<16x32xf32>, vector<16x32xf32> -> vector<16x32xf32>
    %cst_20 = arith.constant dense<0.000000e+00> : vector<16x32xf32>
    %29 = tpu.matmul %28, %8, %cst_20 {dimension_numbers = #tpu.dot_dimension_numbers<[1], [0], [0], [1], [0, 0, 1, 1], [], []>} : vector<16x32xf32>, vector<32x32xf32>, vector<16x32xf32> -> vector<16x32xf32>
    %30 = vector.broadcast %9 : vector<1x32xf32> to vector<16x32xf32>
    %31 = arith.addf %29, %30 : vector<16x32xf32>
    %32 = arith.addf %31, %27 : vector<16x32xf32>
    %cst_21 = arith.constant 0.000000e+00 : f32
    %33 = vector.broadcast %cst_21 : f32 to vector<16x32xf32>
    %34 = arith.maximumf %32, %33 : vector<16x32xf32>
    %cst_22 = arith.constant dense<0.000000e+00> : vector<16x32xf32>
    %35 = tpu.matmul %2, %34, %cst_22 {dimension_numbers = #tpu.dot_dimension_numbers<[1], [0], [0], [1], [0, 0, 1, 1], [], []>} : vector<16x16xf32>, vector<16x32xf32>, vector<16x32xf32> -> vector<16x32xf32>
    %cst_23 = arith.constant dense<0.000000e+00> : vector<16x32xf32>
    %36 = tpu.matmul %35, %8, %cst_23 {dimension_numbers = #tpu.dot_dimension_numbers<[1], [0], [0], [1], [0, 0, 1, 1], [], []>} : vector<16x32xf32>, vector<32x32xf32>, vector<16x32xf32> -> vector<16x32xf32>
    %37 = vector.broadcast %9 : vector<1x32xf32> to vector<16x32xf32>
    %38 = arith.addf %36, %37 : vector<16x32xf32>
    %39 = arith.addf %38, %34 : vector<16x32xf32>
    %cst_24 = arith.constant 0.000000e+00 : f32
    %40 = vector.broadcast %cst_24 : f32 to vector<16x32xf32>
    %41 = arith.maximumf %39, %40 : vector<16x32xf32>
    %42 = tpu.iota {dimensions = array<i32: 0>} : vector<2x16xi32>
    %43 = tpu.iota {dimensions = array<i32: 1>} : vector<2x16xi32>
    %c8_i32 = arith.constant 8 : i32
    %44 = vector.broadcast %c8_i32 : i32 to vector<2x16xi32>
    %45 = arith.cmpi sge, %43, %44 : vector<2x16xi32>
    %46 = arith.extui %45 : vector<2x16xi1> to vector<2x16xi32>
    %47 = arith.cmpi eq, %46, %42 : vector<2x16xi32>
    %cst_25 = arith.constant 1.250000e-01 : f32
    %cst_26 = arith.constant 0.000000e+00 : f32
    %48 = vector.broadcast %cst_25 : f32 to vector<2x16xf32>
    %49 = vector.broadcast %cst_26 : f32 to vector<2x16xf32>
    %50 = arith.select %47, %48, %49 : vector<2x16xi1>, vector<2x16xf32>
    %cst_27 = arith.constant dense<0.000000e+00> : vector<2x32xf32>
    %51 = tpu.matmul %50, %41, %cst_27 {dimension_numbers = #tpu.dot_dimension_numbers<[1], [0], [0], [1], [0, 0, 1, 1], [], []>} : vector<2x16xf32>, vector<16x32xf32>, vector<2x32xf32> -> vector<2x32xf32>
    %cst_28 = arith.constant dense<0.000000e+00> : vector<2x32xf32>
    %52 = tpu.matmul %51, %10, %cst_28 {dimension_numbers = #tpu.dot_dimension_numbers<[1], [0], [0], [1], [0, 0, 1, 1], [], []>} : vector<2x32xf32>, vector<32x32xf32>, vector<2x32xf32> -> vector<2x32xf32>
    %53 = vector.broadcast %11 : vector<1x32xf32> to vector<2x32xf32>
    %54 = arith.addf %52, %53 : vector<2x32xf32>
    %55 = math.tanh %54 : vector<2x32xf32>
    %56 = vector.extract_strided_slice %55 {offsets = [0, 0], sizes = [1, 32], strides = [1, 1]} : vector<2x32xf32> to vector<1x32xf32>
    %57 = vector.extract_strided_slice %55 {offsets = [1, 0], sizes = [1, 32], strides = [1, 1]} : vector<2x32xf32> to vector<1x32xf32>
    %58 = vector.extract_strided_slice %41 {offsets = [0, 0], sizes = [8, 32], strides = [1, 1]} : vector<16x32xf32> to vector<8x32xf32>
    %59 = vector.extract_strided_slice %41 {offsets = [8, 0], sizes = [8, 32], strides = [1, 1]} : vector<16x32xf32> to vector<8x32xf32>
    %60 = tpu.concatenate %56, %57 in 1 : vector<1x32xf32>, vector<1x32xf32> -> vector<1x64xf32>
    %cst_29 = arith.constant dense<0.000000e+00> : vector<8x32xf32>
    %61 = tpu.matmul %3, %12, %cst_29 {dimension_numbers = #tpu.dot_dimension_numbers<[1], [0], [0], [1], [0, 0, 1, 1], [], []>} : vector<8x16xf32>, vector<16x32xf32>, vector<8x32xf32> -> vector<8x32xf32>
    %62 = vector.broadcast %13 : vector<1x32xf32> to vector<8x32xf32>
    %63 = arith.addf %61, %62 : vector<8x32xf32>
    %cst_30 = arith.constant 0.000000e+00 : f32
    %64 = vector.broadcast %cst_30 : f32 to vector<8x32xf32>
    %65 = arith.maximumf %63, %64 : vector<8x32xf32>
    %cst_31 = arith.constant dense<0.000000e+00> : vector<8x32xf32>
    %66 = tpu.matmul %4, %65, %cst_31 {dimension_numbers = #tpu.dot_dimension_numbers<[1], [0], [0], [1], [0, 0, 1, 1], [], []>} : vector<8x8xf32>, vector<8x32xf32>, vector<8x32xf32> -> vector<8x32xf32>
    %cst_32 = arith.constant dense<0.000000e+00> : vector<8x32xf32>
    %67 = tpu.matmul %66, %14, %cst_32 {dimension_numbers = #tpu.dot_dimension_numbers<[1], [0], [0], [1], [0, 0, 1, 1], [], []>} : vector<8x32xf32>, vector<32x32xf32>, vector<8x32xf32> -> vector<8x32xf32>
    %68 = vector.broadcast %15 : vector<1x32xf32> to vector<8x32xf32>
    %69 = arith.addf %67, %68 : vector<8x32xf32>
    %70 = arith.addf %69, %65 : vector<8x32xf32>
    %cst_33 = arith.constant 0.000000e+00 : f32
    %71 = vector.broadcast %cst_33 : f32 to vector<8x32xf32>
    %72 = arith.maximumf %70, %71 : vector<8x32xf32>
    %cst_34 = arith.constant dense<0.000000e+00> : vector<8x32xf32>
    %73 = tpu.matmul %4, %72, %cst_34 {dimension_numbers = #tpu.dot_dimension_numbers<[1], [0], [0], [1], [0, 0, 1, 1], [], []>} : vector<8x8xf32>, vector<8x32xf32>, vector<8x32xf32> -> vector<8x32xf32>
    %cst_35 = arith.constant dense<0.000000e+00> : vector<8x32xf32>
    %74 = tpu.matmul %73, %14, %cst_35 {dimension_numbers = #tpu.dot_dimension_numbers<[1], [0], [0], [1], [0, 0, 1, 1], [], []>} : vector<8x32xf32>, vector<32x32xf32>, vector<8x32xf32> -> vector<8x32xf32>
    %75 = vector.broadcast %15 : vector<1x32xf32> to vector<8x32xf32>
    %76 = arith.addf %74, %75 : vector<8x32xf32>
    %77 = arith.addf %76, %72 : vector<8x32xf32>
    %cst_36 = arith.constant 0.000000e+00 : f32
    %78 = vector.broadcast %cst_36 : f32 to vector<8x32xf32>
    %79 = arith.maximumf %77, %78 : vector<8x32xf32>
    %cst_37 = arith.constant dense<0.000000e+00> : vector<8x32xf32>
    %80 = tpu.matmul %4, %79, %cst_37 {dimension_numbers = #tpu.dot_dimension_numbers<[1], [0], [0], [1], [0, 0, 1, 1], [], []>} : vector<8x8xf32>, vector<8x32xf32>, vector<8x32xf32> -> vector<8x32xf32>
    %cst_38 = arith.constant dense<0.000000e+00> : vector<8x32xf32>
    %81 = tpu.matmul %80, %14, %cst_38 {dimension_numbers = #tpu.dot_dimension_numbers<[1], [0], [0], [1], [0, 0, 1, 1], [], []>} : vector<8x32xf32>, vector<32x32xf32>, vector<8x32xf32> -> vector<8x32xf32>
    %82 = vector.broadcast %15 : vector<1x32xf32> to vector<8x32xf32>
    %83 = arith.addf %81, %82 : vector<8x32xf32>
    %84 = arith.addf %83, %79 : vector<8x32xf32>
    %cst_39 = arith.constant 0.000000e+00 : f32
    %85 = vector.broadcast %cst_39 : f32 to vector<8x32xf32>
    %86 = arith.maximumf %84, %85 : vector<8x32xf32>
    %c128 = arith.constant 128 : index
    %c0_40 = arith.constant 0 : index
    %87 = vector.load %arg1[%c128, %c0_40] : memref<688x32xf32, #tpu.memory_space<vmem>>, vector<64x32xf32>
    %cst_41 = arith.constant dense<0.000000e+00> : vector<1x32xf32>
    %88 = tpu.matmul %60, %87, %cst_41 {dimension_numbers = #tpu.dot_dimension_numbers<[1], [0], [0], [1], [0, 0, 1, 1], [], []>} : vector<1x64xf32>, vector<64x32xf32>, vector<1x32xf32> -> vector<1x32xf32>
    %89 = vector.extract_strided_slice %0 {offsets = [5, 0], sizes = [1, 32], strides = [1, 1]} : vector<16x32xf32> to vector<1x32xf32>
    %90 = arith.addf %88, %89 : vector<1x32xf32>
    %cst_42 = arith.constant 0.000000e+00 : f32
    %91 = vector.broadcast %cst_42 : f32 to vector<1x32xf32>
    %92 = arith.maximumf %90, %91 : vector<1x32xf32>
    %c192 = arith.constant 192 : index
    %c0_43 = arith.constant 0 : index
    %93 = vector.load %arg1[%c192, %c0_43] : memref<688x32xf32, #tpu.memory_space<vmem>>, vector<32x16xf32>
    %cst_44 = arith.constant dense<0.000000e+00> : vector<1x16xf32>
    %94 = tpu.matmul %92, %93, %cst_44 {dimension_numbers = #tpu.dot_dimension_numbers<[1], [0], [0], [1], [0, 0, 1, 1], [], []>} : vector<1x32xf32>, vector<32x16xf32>, vector<1x16xf32> -> vector<1x16xf32>
    %95 = vector.extract_strided_slice %0 {offsets = [6, 0], sizes = [1, 16], strides = [1, 1]} : vector<16x32xf32> to vector<1x16xf32>
    %96 = arith.addf %94, %95 : vector<1x16xf32>
    %97 = tpu.iota {dimensions = array<i32: 1>} : vector<1x16xi32>
    %98 = arith.sitofp %97 : vector<1x16xi32> to vector<1x16xf32>
    %cst_45 = arith.constant dense<0xFF800000> : vector<1xf32>
    %99 = vector.multi_reduction <maximumf>, %96, %cst_45 [1] : vector<1x16xf32> to vector<1xf32>
    %100 = vector.shape_cast %99 : vector<1xf32> to vector<1x1xf32>
    %101 = vector.broadcast %100 : vector<1x1xf32> to vector<1x16xf32>
    %102 = arith.cmpf oge, %96, %101 : vector<1x16xf32>
    %cst_46 = arith.constant 1.600000e+01 : f32
    %103 = vector.broadcast %cst_46 : f32 to vector<1x16xf32>
    %104 = arith.select %102, %98, %103 : vector<1x16xi1>, vector<1x16xf32>
    %cst_47 = arith.constant dense<0x7F800000> : vector<1xf32>
    %105 = vector.multi_reduction <minimumf>, %104, %cst_47 [1] : vector<1x16xf32> to vector<1xf32>
    %106 = vector.shape_cast %105 : vector<1xf32> to vector<1x1xf32>
    %c224 = arith.constant 224 : index
    %c0_48 = arith.constant 0 : index
    %107 = vector.load %arg1[%c224, %c0_48] : memref<688x32xf32, #tpu.memory_space<vmem>>, vector<32x32xf32>
    %cst_49 = arith.constant dense<0.000000e+00> : vector<8x32xf32>
    %108 = tpu.matmul %86, %107, %cst_49 {dimension_numbers = #tpu.dot_dimension_numbers<[1], [0], [0], [1], [0, 0, 1, 1], [], []>} : vector<8x32xf32>, vector<32x32xf32>, vector<8x32xf32> -> vector<8x32xf32>
    %c256 = arith.constant 256 : index
    %c0_50 = arith.constant 0 : index
    %109 = vector.load %arg1[%c256, %c0_50] : memref<688x32xf32, #tpu.memory_space<vmem>>, vector<32x32xf32>
    %cst_51 = arith.constant dense<0.000000e+00> : vector<1x32xf32>
    %110 = tpu.matmul %5, %109, %cst_51 {dimension_numbers = #tpu.dot_dimension_numbers<[1], [0], [0], [1], [0, 0, 1, 1], [], []>} : vector<1x32xf32>, vector<32x32xf32>, vector<1x32xf32> -> vector<1x32xf32>
    %111 = vector.broadcast %110 : vector<1x32xf32> to vector<8x32xf32>
    %112 = arith.addf %108, %111 : vector<8x32xf32>
    %113 = vector.extract_strided_slice %0 {offsets = [7, 0], sizes = [1, 32], strides = [1, 1]} : vector<16x32xf32> to vector<1x32xf32>
    %114 = vector.broadcast %113 : vector<1x32xf32> to vector<8x32xf32>
    %115 = arith.addf %112, %114 : vector<8x32xf32>
    %cst_52 = arith.constant 0.000000e+00 : f32
    %116 = vector.broadcast %cst_52 : f32 to vector<8x32xf32>
    %117 = arith.maximumf %115, %116 : vector<8x32xf32>
    %c288 = arith.constant 288 : index
    %c0_53 = arith.constant 0 : index
    %118 = vector.load %arg1[%c288, %c0_53] : memref<688x32xf32, #tpu.memory_space<vmem>>, vector<32x1xf32>
    %cst_54 = arith.constant dense<0.000000e+00> : vector<8x1xf32>
    %119 = tpu.matmul %117, %118, %cst_54 {dimension_numbers = #tpu.dot_dimension_numbers<[1], [0], [0], [1], [0, 0, 1, 1], [], []>} : vector<8x32xf32>, vector<32x1xf32>, vector<8x1xf32> -> vector<8x1xf32>
    %120 = vector.extract_strided_slice %0 {offsets = [8, 0], sizes = [1, 1], strides = [1, 1]} : vector<16x32xf32> to vector<1x1xf32>
    %121 = vector.broadcast %120 : vector<1x1xf32> to vector<8x1xf32>
    %122 = arith.addf %119, %121 : vector<8x1xf32>
    %123 = tpu.iota {dimensions = array<i32: 0>} : vector<8x1xi32>
    %124 = arith.sitofp %123 : vector<8x1xi32> to vector<8x1xf32>
    %cst_55 = arith.constant dense<0xFF800000> : vector<1xf32>
    %125 = vector.multi_reduction <maximumf>, %122, %cst_55 [0] : vector<8x1xf32> to vector<1xf32>
    %126 = vector.shape_cast %125 : vector<1xf32> to vector<1x1xf32>
    %127 = vector.broadcast %126 : vector<1x1xf32> to vector<8x1xf32>
    %128 = arith.cmpf oge, %122, %127 : vector<8x1xf32>
    %cst_56 = arith.constant 8.000000e+00 : f32
    %129 = vector.broadcast %cst_56 : f32 to vector<8x1xf32>
    %130 = arith.select %128, %124, %129 : vector<8x1xi1>, vector<8x1xf32>
    %cst_57 = arith.constant dense<0x7F800000> : vector<1xf32>
    %131 = vector.multi_reduction <minimumf>, %130, %cst_57 [0] : vector<8x1xf32> to vector<1xf32>
    %132 = vector.shape_cast %131 : vector<1xf32> to vector<1x1xf32>
    %c320 = arith.constant 320 : index
    %c0_58 = arith.constant 0 : index
    %133 = vector.load %arg1[%c320, %c0_58] : memref<688x32xf32, #tpu.memory_space<vmem>>, vector<32x32xf32>
    %cst_59 = arith.constant dense<0.000000e+00> : vector<8x32xf32>
    %134 = tpu.matmul %58, %133, %cst_59 {dimension_numbers = #tpu.dot_dimension_numbers<[1], [0], [0], [1], [0, 0, 1, 1], [], []>} : vector<8x32xf32>, vector<32x32xf32>, vector<8x32xf32> -> vector<8x32xf32>
    %c352 = arith.constant 352 : index
    %c0_60 = arith.constant 0 : index
    %135 = vector.load %arg1[%c352, %c0_60] : memref<688x32xf32, #tpu.memory_space<vmem>>, vector<32x32xf32>
    %cst_61 = arith.constant dense<0.000000e+00> : vector<1x32xf32>
    %136 = tpu.matmul %57, %135, %cst_61 {dimension_numbers = #tpu.dot_dimension_numbers<[1], [0], [0], [1], [0, 0, 1, 1], [], []>} : vector<1x32xf32>, vector<32x32xf32>, vector<1x32xf32> -> vector<1x32xf32>
    %137 = vector.broadcast %136 : vector<1x32xf32> to vector<8x32xf32>
    %138 = arith.addf %134, %137 : vector<8x32xf32>
    %139 = vector.extract_strided_slice %0 {offsets = [9, 0], sizes = [1, 32], strides = [1, 1]} : vector<16x32xf32> to vector<1x32xf32>
    %140 = vector.broadcast %139 : vector<1x32xf32> to vector<8x32xf32>
    %141 = arith.addf %138, %140 : vector<8x32xf32>
    %cst_62 = arith.constant 0.000000e+00 : f32
    %142 = vector.broadcast %cst_62 : f32 to vector<8x32xf32>
    %143 = arith.maximumf %141, %142 : vector<8x32xf32>
    %c384 = arith.constant 384 : index
    %c0_63 = arith.constant 0 : index
    %144 = vector.load %arg1[%c384, %c0_63] : memref<688x32xf32, #tpu.memory_space<vmem>>, vector<32x1xf32>
    %cst_64 = arith.constant dense<0.000000e+00> : vector<8x1xf32>
    %145 = tpu.matmul %143, %144, %cst_64 {dimension_numbers = #tpu.dot_dimension_numbers<[1], [0], [0], [1], [0, 0, 1, 1], [], []>} : vector<8x32xf32>, vector<32x1xf32>, vector<8x1xf32> -> vector<8x1xf32>
    %146 = vector.extract_strided_slice %0 {offsets = [10, 0], sizes = [1, 1], strides = [1, 1]} : vector<16x32xf32> to vector<1x1xf32>
    %147 = vector.broadcast %146 : vector<1x1xf32> to vector<8x1xf32>
    %148 = arith.addf %145, %147 : vector<8x1xf32>
    %149 = tpu.iota {dimensions = array<i32: 0>} : vector<8x1xi32>
    %150 = arith.sitofp %149 : vector<8x1xi32> to vector<8x1xf32>
    %cst_65 = arith.constant dense<0xFF800000> : vector<1xf32>
    %151 = vector.multi_reduction <maximumf>, %148, %cst_65 [0] : vector<8x1xf32> to vector<1xf32>
    %152 = vector.shape_cast %151 : vector<1xf32> to vector<1x1xf32>
    %153 = vector.broadcast %152 : vector<1x1xf32> to vector<8x1xf32>
    %154 = arith.cmpf oge, %148, %153 : vector<8x1xf32>
    %cst_66 = arith.constant 8.000000e+00 : f32
    %155 = vector.broadcast %cst_66 : f32 to vector<8x1xf32>
    %156 = arith.select %154, %150, %155 : vector<8x1xi1>, vector<8x1xf32>
    %cst_67 = arith.constant dense<0x7F800000> : vector<1xf32>
    %157 = vector.multi_reduction <minimumf>, %156, %cst_67 [0] : vector<8x1xf32> to vector<1xf32>
    %158 = vector.shape_cast %157 : vector<1xf32> to vector<1x1xf32>
    %c416 = arith.constant 416 : index
    %c0_68 = arith.constant 0 : index
    %159 = vector.load %arg1[%c416, %c0_68] : memref<688x32xf32, #tpu.memory_space<vmem>>, vector<32x32xf32>
    %cst_69 = arith.constant dense<0.000000e+00> : vector<8x32xf32>
    %160 = tpu.matmul %59, %159, %cst_69 {dimension_numbers = #tpu.dot_dimension_numbers<[1], [0], [0], [1], [0, 0, 1, 1], [], []>} : vector<8x32xf32>, vector<32x32xf32>, vector<8x32xf32> -> vector<8x32xf32>
    %c448 = arith.constant 448 : index
    %c0_70 = arith.constant 0 : index
    %161 = vector.load %arg1[%c448, %c0_70] : memref<688x32xf32, #tpu.memory_space<vmem>>, vector<64x32xf32>
    %cst_71 = arith.constant dense<0.000000e+00> : vector<1x32xf32>
    %162 = tpu.matmul %60, %161, %cst_71 {dimension_numbers = #tpu.dot_dimension_numbers<[1], [0], [0], [1], [0, 0, 1, 1], [], []>} : vector<1x64xf32>, vector<64x32xf32>, vector<1x32xf32> -> vector<1x32xf32>
    %163 = vector.broadcast %162 : vector<1x32xf32> to vector<8x32xf32>
    %164 = arith.addf %160, %163 : vector<8x32xf32>
    %165 = vector.extract_strided_slice %0 {offsets = [11, 0], sizes = [1, 32], strides = [1, 1]} : vector<16x32xf32> to vector<1x32xf32>
    %166 = vector.broadcast %165 : vector<1x32xf32> to vector<8x32xf32>
    %167 = arith.addf %164, %166 : vector<8x32xf32>
    %cst_72 = arith.constant 0.000000e+00 : f32
    %168 = vector.broadcast %cst_72 : f32 to vector<8x32xf32>
    %169 = arith.maximumf %167, %168 : vector<8x32xf32>
    %c512 = arith.constant 512 : index
    %c0_73 = arith.constant 0 : index
    %170 = vector.load %arg1[%c512, %c0_73] : memref<688x32xf32, #tpu.memory_space<vmem>>, vector<32x1xf32>
    %cst_74 = arith.constant dense<0.000000e+00> : vector<8x1xf32>
    %171 = tpu.matmul %169, %170, %cst_74 {dimension_numbers = #tpu.dot_dimension_numbers<[1], [0], [0], [1], [0, 0, 1, 1], [], []>} : vector<8x32xf32>, vector<32x1xf32>, vector<8x1xf32> -> vector<8x1xf32>
    %172 = vector.extract_strided_slice %0 {offsets = [12, 0], sizes = [1, 1], strides = [1, 1]} : vector<16x32xf32> to vector<1x1xf32>
    %173 = vector.broadcast %172 : vector<1x1xf32> to vector<8x1xf32>
    %174 = arith.addf %171, %173 : vector<8x1xf32>
    %175 = tpu.iota {dimensions = array<i32: 0>} : vector<8x1xi32>
    %176 = arith.sitofp %175 : vector<8x1xi32> to vector<8x1xf32>
    %cst_75 = arith.constant dense<0xFF800000> : vector<1xf32>
    %177 = vector.multi_reduction <maximumf>, %174, %cst_75 [0] : vector<8x1xf32> to vector<1xf32>
    %178 = vector.shape_cast %177 : vector<1xf32> to vector<1x1xf32>
    %179 = vector.broadcast %178 : vector<1x1xf32> to vector<8x1xf32>
    %180 = arith.cmpf oge, %174, %179 : vector<8x1xf32>
    %cst_76 = arith.constant 8.000000e+00 : f32
    %181 = vector.broadcast %cst_76 : f32 to vector<8x1xf32>
    %182 = arith.select %180, %176, %181 : vector<8x1xi1>, vector<8x1xf32>
    %cst_77 = arith.constant dense<0x7F800000> : vector<1xf32>
    %183 = vector.multi_reduction <minimumf>, %182, %cst_77 [0] : vector<8x1xf32> to vector<1xf32>
    %184 = vector.shape_cast %183 : vector<1xf32> to vector<1x1xf32>
    %185 = tpu.iota {dimensions = array<i32: 0>} : vector<8x1xi32>
    %186 = arith.fptosi %158 : vector<1x1xf32> to vector<1x1xi32>
    %187 = vector.broadcast %186 : vector<1x1xi32> to vector<8x1xi32>
    %188 = arith.cmpi eq, %185, %187 : vector<8x1xi32>
    %cst_78 = arith.constant 0.000000e+00 : f32
    %189 = vector.shape_cast %188 : vector<8x1xi1> to vector<8x1xi1>
    %190 = vector.broadcast %189 : vector<8x1xi1> to vector<8x32xi1>
    %191 = vector.broadcast %cst_78 : f32 to vector<8x32xf32>
    %192 = arith.select %190, %58, %191 : vector<8x32xi1>, vector<8x32xf32>
    %cst_79 = arith.constant dense<0.000000e+00> : vector<32xf32>
    %193 = vector.multi_reduction <add>, %192, %cst_79 [0] : vector<8x32xf32> to vector<32xf32>
    %194 = vector.shape_cast %193 : vector<32xf32> to vector<1x32xf32>
    %195 = tpu.iota {dimensions = array<i32: 0>} : vector<8x1xi32>
    %196 = arith.fptosi %184 : vector<1x1xf32> to vector<1x1xi32>
    %197 = vector.broadcast %196 : vector<1x1xi32> to vector<8x1xi32>
    %198 = arith.cmpi eq, %195, %197 : vector<8x1xi32>
    %cst_80 = arith.constant 0.000000e+00 : f32
    %199 = vector.shape_cast %198 : vector<8x1xi1> to vector<8x1xi1>
    %200 = vector.broadcast %199 : vector<8x1xi1> to vector<8x32xi1>
    %201 = vector.broadcast %cst_80 : f32 to vector<8x32xf32>
    %202 = arith.select %200, %59, %201 : vector<8x32xi1>, vector<8x32xf32>
    %cst_81 = arith.constant dense<0.000000e+00> : vector<32xf32>
    %203 = vector.multi_reduction <add>, %202, %cst_81 [0] : vector<8x32xf32> to vector<32xf32>
    %204 = vector.shape_cast %203 : vector<32xf32> to vector<1x32xf32>
    %c544 = arith.constant 544 : index
    %c0_82 = arith.constant 0 : index
    %205 = vector.load %arg1[%c544, %c0_82] : memref<688x32xf32, #tpu.memory_space<vmem>>, vector<32x32xf32>
    %cst_83 = arith.constant dense<0.000000e+00> : vector<1x32xf32>
    %206 = tpu.matmul %194, %205, %cst_83 {dimension_numbers = #tpu.dot_dimension_numbers<[1], [0], [0], [1], [0, 0, 1, 1], [], []>} : vector<1x32xf32>, vector<32x32xf32>, vector<1x32xf32> -> vector<1x32xf32>
    %c576 = arith.constant 576 : index
    %c0_84 = arith.constant 0 : index
    %207 = vector.load %arg1[%c576, %c0_84] : memref<688x32xf32, #tpu.memory_space<vmem>>, vector<32x32xf32>
    %cst_85 = arith.constant dense<0.000000e+00> : vector<1x32xf32>
    %208 = tpu.matmul %204, %207, %cst_85 {dimension_numbers = #tpu.dot_dimension_numbers<[1], [0], [0], [1], [0, 0, 1, 1], [], []>} : vector<1x32xf32>, vector<32x32xf32>, vector<1x32xf32> -> vector<1x32xf32>
    %209 = arith.addf %206, %208 : vector<1x32xf32>
    %c608 = arith.constant 608 : index
    %c0_86 = arith.constant 0 : index
    %210 = vector.load %arg1[%c608, %c0_86] : memref<688x32xf32, #tpu.memory_space<vmem>>, vector<32x32xf32>
    %cst_87 = arith.constant dense<0.000000e+00> : vector<1x32xf32>
    %211 = tpu.matmul %57, %210, %cst_87 {dimension_numbers = #tpu.dot_dimension_numbers<[1], [0], [0], [1], [0, 0, 1, 1], [], []>} : vector<1x32xf32>, vector<32x32xf32>, vector<1x32xf32> -> vector<1x32xf32>
    %212 = arith.addf %209, %211 : vector<1x32xf32>
    %213 = vector.extract_strided_slice %0 {offsets = [13, 0], sizes = [1, 32], strides = [1, 1]} : vector<16x32xf32> to vector<1x32xf32>
    %214 = arith.addf %212, %213 : vector<1x32xf32>
    %cst_88 = arith.constant 0.000000e+00 : f32
    %215 = vector.broadcast %cst_88 : f32 to vector<1x32xf32>
    %216 = arith.maximumf %214, %215 : vector<1x32xf32>
    %c640 = arith.constant 640 : index
    %c0_89 = arith.constant 0 : index
    %217 = vector.load %arg1[%c640, %c0_89] : memref<688x32xf32, #tpu.memory_space<vmem>>, vector<32x4xf32>
    %cst_90 = arith.constant dense<0.000000e+00> : vector<1x4xf32>
    %218 = tpu.matmul %216, %217, %cst_90 {dimension_numbers = #tpu.dot_dimension_numbers<[1], [0], [0], [1], [0, 0, 1, 1], [], []>} : vector<1x32xf32>, vector<32x4xf32>, vector<1x4xf32> -> vector<1x4xf32>
    %219 = vector.extract_strided_slice %0 {offsets = [14, 0], sizes = [1, 4], strides = [1, 1]} : vector<16x32xf32> to vector<1x4xf32>
    %220 = arith.addf %218, %219 : vector<1x4xf32>
    %221 = tpu.iota {dimensions = array<i32: 1>} : vector<1x4xi32>
    %222 = arith.sitofp %221 : vector<1x4xi32> to vector<1x4xf32>
    %cst_91 = arith.constant dense<0xFF800000> : vector<1xf32>
    %223 = vector.multi_reduction <maximumf>, %220, %cst_91 [1] : vector<1x4xf32> to vector<1xf32>
    %224 = vector.shape_cast %223 : vector<1xf32> to vector<1x1xf32>
    %225 = vector.broadcast %224 : vector<1x1xf32> to vector<1x4xf32>
    %226 = arith.cmpf oge, %220, %225 : vector<1x4xf32>
    %cst_92 = arith.constant 4.000000e+00 : f32
    %227 = vector.broadcast %cst_92 : f32 to vector<1x4xf32>
    %228 = arith.select %226, %222, %227 : vector<1x4xi1>, vector<1x4xf32>
    %cst_93 = arith.constant dense<0x7F800000> : vector<1xf32>
    %229 = vector.multi_reduction <minimumf>, %228, %cst_93 [1] : vector<1x4xf32> to vector<1xf32>
    %230 = vector.shape_cast %229 : vector<1xf32> to vector<1x1xf32>
    %c0_94 = arith.constant 0 : index
    %c0_95 = arith.constant 0 : index
    %231 = vector.load %arg3[%c0_94, %c0_95] : memref<2x32xf32, #tpu.memory_space<vmem>>, vector<2x32xf32>
    tpu.vector_store %arg3[%c0_94, %c0_95], %55 {strides = array<i32>} : memref<2x32xf32, #tpu.memory_space<vmem>>, vector<2x32xf32>,
    %232 = tpu.iota {dimensions = array<i32: 0>} : vector<8x128xi32>
    %cst_96 = arith.constant 0.000000e+00 : f32
    %233 = vector.broadcast %cst_96 : f32 to vector<8x128xf32>
    %c0_i32 = arith.constant 0 : i32
    %234 = vector.broadcast %c0_i32 : i32 to vector<8x128xi32>
    %235 = arith.cmpi eq, %232, %234 : vector<8x128xi32>
    %236 = vector.shape_cast %106 : vector<1x1xf32> to vector<1x1xf32>
    %237 = vector.broadcast %236 : vector<1x1xf32> to vector<8x128xf32>
    %238 = arith.select %235, %237, %233 : vector<8x128xi1>, vector<8x128xf32>
    %c1_i32 = arith.constant 1 : i32
    %239 = vector.broadcast %c1_i32 : i32 to vector<8x128xi32>
    %240 = arith.cmpi eq, %232, %239 : vector<8x128xi32>
    %241 = vector.shape_cast %132 : vector<1x1xf32> to vector<1x1xf32>
    %242 = vector.broadcast %241 : vector<1x1xf32> to vector<8x128xf32>
    %243 = arith.select %240, %242, %238 : vector<8x128xi1>, vector<8x128xf32>
    %c2_i32 = arith.constant 2 : i32
    %244 = vector.broadcast %c2_i32 : i32 to vector<8x128xi32>
    %245 = arith.cmpi eq, %232, %244 : vector<8x128xi32>
    %246 = vector.shape_cast %158 : vector<1x1xf32> to vector<1x1xf32>
    %247 = vector.broadcast %246 : vector<1x1xf32> to vector<8x128xf32>
    %248 = arith.select %245, %247, %243 : vector<8x128xi1>, vector<8x128xf32>
    %c3_i32 = arith.constant 3 : i32
    %249 = vector.broadcast %c3_i32 : i32 to vector<8x128xi32>
    %250 = arith.cmpi eq, %232, %249 : vector<8x128xi32>
    %251 = vector.shape_cast %184 : vector<1x1xf32> to vector<1x1xf32>
    %252 = vector.broadcast %251 : vector<1x1xf32> to vector<8x128xf32>
    %253 = arith.select %250, %252, %248 : vector<8x128xi1>, vector<8x128xf32>
    %c4_i32 = arith.constant 4 : i32
    %254 = vector.broadcast %c4_i32 : i32 to vector<8x128xi32>
    %255 = arith.cmpi eq, %232, %254 : vector<8x128xi32>
    %256 = vector.shape_cast %230 : vector<1x1xf32> to vector<1x1xf32>
    %257 = vector.broadcast %256 : vector<1x1xf32> to vector<8x128xf32>
    %258 = arith.select %255, %257, %253 : vector<8x128xi1>, vector<8x128xf32>
    %259 = arith.fptosi %258 : vector<8x128xf32> to vector<8x128xi32>
    %c0_97 = arith.constant 0 : index
    %c0_98 = arith.constant 0 : index
    %260 = vector.load %arg2[%c0_97, %c0_98] : memref<8x128xi32, #tpu.memory_space<vmem>>, vector<8x128xi32>
    tpu.vector_store %arg2[%c0_97, %c0_98], %259 {strides = array<i32>} : memref<8x128xi32, #tpu.memory_space<vmem>>, vector<8x128xi32>,
    return
  }
}

</mosaic_0001>

<llo_original>
// kernel: molgena_infer.1
$region0: #{molgena_infer.1}
  #allocation0 [shape = 'u32[]', space=smem, size = 0x4, offset = 0x4, fixed_abs, tag = 'smem constant byte address 0x4 - core index']
  #allocation1 [shape = 'u32[72,128]{1,0:T(1,128)}', space=vmem, size = 0x9000, scoped, tag = 'internal scratch']
  %s0 = inlined_call_operand.vmem [shape: f32[32,32], index: 0, kind: input, shape index: {}]
  %s1 = inlined_call_operand.vmem [shape: f32[688,32], index: 1, kind: input, shape index: {}]
  %s2 = inlined_call_operand.hbm [shape: s32[8,128], index: 2, kind: output, shape index: {0}]
  %s3 = inlined_call_operand.hbm [shape: f32[2,32], index: 3, kind: output, shape index: {1}]
  %4 = xla_tuple %s2, %s3
  %s5 = sld [smem:[#allocation0]]
  $region26: #{molgena_infer.1} parent=0
    _
  %s7 = ssub.s32 1, %s5
  %s8 = scalar_select 0, %s7, %s5
  $region1: #{molgena_infer.1} parent=0
    #allocation2 [shape = 'u8[4096]{0}', space=vmem, size = 0x1000, scoped, tag = 'output window, operand 0, single buffered']
    #allocation3 [shape = 's32[1]{0}', space=sflag, size = 0x4, scoped, tag = 'scoped memory for molgena_infer.1']
    #allocation4 [shape = 'u8[1024]{0}', space=vmem, size = 0x400, scoped, tag = 'output window, operand 1, single buffered']
    #allocation5 [shape = 's32[1]{0}', space=sflag, size = 0x4, scoped, tag = 'scoped memory for molgena_infer.1']
    %9 = vsyncpa [#allocation3], 0
    %10 = vsyncpa [#allocation5], 0
    // Predicated region
    $region2: #{molgena_infer.1} parent=1 // pred_check
      _
    $region3: #{molgena_infer.1} parent=1 // pred_check_branch
      %12 = sbr.rel (0) target = $region5
    $region4: #{molgena_infer.1} parent=1 // pred_region
      _
    $region5: #{molgena_infer.1} parent=1 // pred_fallthru
      _
    // Predicated region
    $region6: #{molgena_infer.1} parent=1 // pred_check
      _
    $region7: #{molgena_infer.1} parent=1 // pred_check_branch
      %14 = sbr.rel (0) target = $region9
    $region8: #{molgena_infer.1} parent=1 // pred_region
      _
    $region9: #{molgena_infer.1} parent=1 // pred_fallthru
      _
    %v15 = vld [vmem:[%s1 + $0x2a0] sm:$0xff]
    %v16 = vld [vmem:[%s1 + $0x2a8] sm:$0xff]
    %v17 = vld [vmem:[%s0] sm:$0xff]
    %v18 = vld [vmem:[%s0 + $0x8] sm:$0xff]
    %v19 = vld [vmem:[%s0 + $0x10] sm:$0xff]
    %v20 = vld [vmem:[%s0 + $0x18] sm:$0x1]
    %v21 = vld [vmem:[%s1] sm:$0xff]
    %v22 = vld [vmem:[%s1 + $0x8] sm:$0xff]
    %v23 = vld [vmem:[%s1 + $0x10] sm:$0xff]
    %v24 = vld [vmem:[%s1 + $0x18] sm:$0xff]
    %v25 = vld [vmem:[%s1 + $0x20] sm:$0xff]
    %v26 = vld [vmem:[%s1 + $0x28] sm:$0xff]
    %v27 = vld [vmem:[%s1 + $0x30] sm:$0xff]
    %v28 = vld [vmem:[%s1 + $0x38] sm:$0xff]
    %v29 = vld [vmem:[%s1 + $0x40] sm:$0xff]
    %v30 = vld [vmem:[%s1 + $0x48] sm:$0xff]
    %v31 = vld [vmem:[%s1 + $0x50] sm:$0xff]
    %v32 = vld [vmem:[%s1 + $0x58] sm:$0xff]
    %v33 = vld [vmem:[%s1 + $0x60] sm:$0xff]
    %v34 = vld [vmem:[%s1 + $0x68] sm:$0xff]
    %v35 = vld [vmem:[%s1 + $0x70] sm:$0xff]
    %v36 = vld [vmem:[%s1 + $0x78] sm:$0xff]
    %v37 = vperm.slane %v15, 0
    %vm38 = vcmask 130048
    %v40 = vsel %vm38, %v17, 0
    %v43 = vsel %vm38, %v18, 0
    %45 = vmatpush.msra.mxu0 0.0
    %46 = vmatpush.msra.mxu0 0.0
    %47 = vmatpush.msra.mxu0 0.0
    %48 = vmatpush.msra.mxu0 0.0
    %49 = vmatpush.msra.mxu0 0.0
    %50 = vmatpush.msra.mxu0 0.0
    %51 = vmatpush.msra.mxu0 0.0
    %52 = vmatpush.msra.mxu0 0.0
    %53 = vmatpush.msra.mxu0 0.0
    %54 = vmatpush.msra.mxu0 0.0
    %55 = vmatpush.msra.mxu0 0.0
    %56 = vmatpush.msra.mxu0 0.0
    %57 = vmatpush.msra.mxu0 0.0
    %58 = vmatpush.msra.mxu0 0.0
    %59 = vmatpush.msra.mxu0 %v22
    %60 = vmatpush.msra.mxu0 %v21
    %61 = vmatmul.f32.gmra.mxu0 %v40
    %v62 = vpop.f32.mrf.mxu0
    %v63 = vadd.f32 %v37, %v62
    %64 = vmatmul.f32.gmra.mxu0 %v43
    %v65 = vpop.f32.mrf.mxu0
    %v66 = vadd.f32 %v37, %v65
    %67 = vdwg.mxu0
    %v68 = vmax.f32 %v63, 0.0
    %v69 = vmax.f32 %v66, 0.0
    %70 = vrot.lane.b32.xlu0 %v17, 112
    %v71 = vpop.permute.xlu0 %70
    %72 = vrot.lane.b32.xlu0 %v18, 112
    %v73 = vpop.permute.xlu0 %72
    %v74 = vsel %vm38, %v71, 0
    %v76 = vsel %vm38, %v73, 0
    %78 = vmatpush.msra.mxu0 0.0
    %79 = vmatpush.msra.mxu0 0.0
    %80 = vmatpush.msra.mxu0 0.0
    %81 = vmatpush.msra.mxu0 0.0
    %82 = vmatpush.msra.mxu0 0.0
    %83 = vmatpush.msra.mxu0 0.0
    %84 = vmatpush.msra.mxu0 0.0
    %85 = vmatpush.msra.mxu0 0.0
    %86 = vmatpush.msra.mxu0 0.0
    %87 = vmatpush.msra.mxu0 0.0
    %88 = vmatpush.msra.mxu0 0.0
    %89 = vmatpush.msra.mxu0 0.0
    %90 = vmatpush.msra.mxu0 0.0
    %91 = vmatpush.msra.mxu0 0.0
    %92 = vmatpush.msra.mxu0 %v69
    %93 = vmatpush.msra.mxu0 %v68
    %94 = vmatmul.f32.gmra.mxu0 %v74
    %v95 = vpop.f32.mrf.mxu0
    %v96 = vadd.f32 0.0, %v95
    %97 = vmatmul.f32.gmra.mxu0 %v76
    %v98 = vpop.f32.mrf.mxu0
    %v99 = vadd.f32 0.0, %v98
    %100 = vdwg.mxu0
    %v101 = vperm.slane %v15, 1
    %vm102 = vcmask 261120
    %v104 = vsel %vm102, %v96, 0
    %v107 = vsel %vm102, %v99, 0
    %109 = vmatpush.msra.mxu0 0.0
    %110 = vmatpush.msra.mxu0 0.0
    %111 = vmatpush.msra.mxu0 0.0
    %112 = vmatpush.msra.mxu0 0.0
    %113 = vmatpush.msra.mxu0 0.0
    %114 = vmatpush.msra.mxu0 0.0
    %115 = vmatpush.msra.mxu0 0.0
    %116 = vmatpush.msra.mxu0 0.0
    %117 = vmatpush.msra.mxu0 0.0
    %118 = vmatpush.msra.mxu0 0.0
    %119 = vmatpush.msra.mxu0 0.0
    %120 = vmatpush.msra.mxu0 0.0
    %121 = vmatpush.msra.mxu0 %v26
    %122 = vmatpush.msra.mxu0 %v25
    %123 = vmatpush.msra.mxu0 %v24
    %124 = vmatpush.msra.mxu0 %v23
    %125 = vmatmul.f32.gmra.mxu0 %v104
    %v126 = vpop.f32.mrf.mxu0
    %v127 = vadd.f32 %v101, %v126
    %128 = vmatmul.f32.gmra.mxu0 %v107
    %v129 = vpop.f32.mrf.mxu0
    %v130 = vadd.f32 %v101, %v129
    %131 = vdwg.mxu0
    %v132 = vadd.f32 %v127, %v68
    %v133 = vadd.f32 %v130, %v69
    %v134 = vmax.f32 %v132, 0.0
    %v135 = vmax.f32 %v133, 0.0
    %136 = vmatpush.msra.mxu0 0.0
    %137 = vmatpush.msra.mxu0 0.0
    %138 = vmatpush.msra.mxu0 0.0
    %139 = vmatpush.msra.mxu0 0.0
    %140 = vmatpush.msra.mxu0 0.0
    %141 = vmatpush.msra.mxu0 0.0
    %142 = vmatpush.msra.mxu0 0.0
    %143 = vmatpush.msra.mxu0 0.0
    %144 = vmatpush.msra.mxu0 0.0
    %145 = vmatpush.msra.mxu0 0.0
    %146 = vmatpush.msra.mxu0 0.0
    %147 = vmatpush.msra.mxu0 0.0
    %148 = vmatpush.msra.mxu0 0.0
    %149 = vmatpush.msra.mxu0 0.0
    %150 = vmatpush.msra.mxu0 %v135
    %151 = vmatpush.msra.mxu0 %v134
    %152 = vmatmul.f32.gmra.mxu0 %v74
    %v153 = vpop.f32.mrf.mxu0
    %v154 = vadd.f32 0.0, %v153
    %155 = vmatmul.f32.gmra.mxu0 %v76
    %v156 = vpop.f32.mrf.mxu0
    %v157 = vadd.f32 0.0, %v156
    %158 = vdwg.mxu0
    %v160 = vsel %vm102, %v154, 0
    %v163 = vsel %vm102, %v157, 0
    %165 = vmatpush.msra.mxu0 0.0
    %166 = vmatpush.msra.mxu0 0.0
    %167 = vmatpush.msra.mxu0 0.0
    %168 = vmatpush.msra.mxu0 0.0
    %169 = vmatpush.msra.mxu0 0.0
    %170 = vmatpush.msra.mxu0 0.0
    %171 = vmatpush.msra.mxu0 0.0
    %172 = vmatpush.msra.mxu0 0.0
    %173 = vmatpush.msra.mxu0 0.0
    %174 = vmatpush.msra.mxu0 0.0
    %175 = vmatpush.msra.mxu0 0.0
    %176 = vmatpush.msra.mxu0 0.0
    %177 = vmatpush.msra.mxu0 %v26
    %178 = vmatpush.msra.mxu0 %v25
    %179 = vmatpush.msra.mxu0 %v24
    %180 = vmatpush.msra.mxu0 %v23
    %181 = vmatmul.f32.gmra.mxu0 %v160
    %v182 = vpop.f32.mrf.mxu0
    %v183 = vadd.f32 %v101, %v182
    %184 = vmatmul.f32.gmra.mxu0 %v163
    %v185 = vpop.f32.mrf.mxu0
    %v186 = vadd.f32 %v101, %v185
    %187 = vdwg.mxu0
    %v188 = vadd.f32 %v183, %v134
    %v189 = vadd.f32 %v186, %v135
    %v190 = vmax.f32 %v188, 0.0
    %v191 = vmax.f32 %v189, 0.0
    %192 = vmatpush.msra.mxu0 0.0
    %193 = vmatpush.msra.mxu0 0.0
    %194 = vmatpush.msra.mxu0 0.0
    %195 = vmatpush.msra.mxu0 0.0
    %196 = vmatpush.msra.mxu0 0.0
    %197 = vmatpush.msra.mxu0 0.0
    %198 = vmatpush.msra.mxu0 0.0
    %199 = vmatpush.msra.mxu0 0.0
    %200 = vmatpush.msra.mxu0 0.0
    %201 = vmatpush.msra.mxu0 0.0
    %202 = vmatpush.msra.mxu0 0.0
    %203 = vmatpush.msra.mxu0 0.0
    %204 = vmatpush.msra.mxu0 0.0
    %205 = vmatpush.msra.mxu0 0.0
    %206 = vmatpush.msra.mxu0 %v191
    %207 = vmatpush.msra.mxu0 %v190
    %208 = vmatmul.f32.gmra.mxu0 %v74
    %v209 = vpop.f32.mrf.mxu0
    %v210 = vadd.f32 0.0, %v209
    %211 = vmatmul.f32.gmra.mxu0 %v76
    %v212 = vpop.f32.mrf.mxu0
    %v213 = vadd.f32 0.0, %v212
    %214 = vdwg.mxu0
    %v216 = vsel %vm102, %v210, 0
    %v219 = vsel %vm102, %v213, 0
    %221 = vmatpush.msra.mxu0 0.0
    %222 = vmatpush.msra.mxu0 0.0
    %223 = vmatpush.msra.mxu0 0.0
    %224 = vmatpush.msra.mxu0 0.0
    %225 = vmatpush.msra.mxu0 0.0
    %226 = vmatpush.msra.mxu0 0.0
    %227 = vmatpush.msra.mxu0 0.0
    %228 = vmatpush.msra.mxu0 0.0
    %229 = vmatpush.msra.mxu0 0.0
    %230 = vmatpush.msra.mxu0 0.0
    %231 = vmatpush.msra.mxu0 0.0
    %232 = vmatpush.msra.mxu0 0.0
    %233 = vmatpush.msra.mxu0 %v26
    %234 = vmatpush.msra.mxu0 %v25
    %235 = vmatpush.msra.mxu0 %v24
    %236 = vmatpush.msra.mxu0 %v23
    %237 = vmatmul.f32.gmra.mxu0 %v216
    %v238 = vpop.f32.mrf.mxu0
    %v239 = vadd.f32 %v101, %v238
    %240 = vmatmul.f32.gmra.mxu0 %v219
    %v241 = vpop.f32.mrf.mxu0
    %v242 = vadd.f32 %v101, %v241
    %243 = vdwg.mxu0
    %v244 = vadd.f32 %v239, %v190
    %v245 = vadd.f32 %v242, %v191
    %v246 = vmax.f32 %v244, 0.0
    %v247 = vmax.f32 %v245, 0.0
    %v248 = vlaneseq
    %v249 = vshrl.u32 %v248, 7
    %v250 = vlaneseq
    %v251 = vand.u32 %v250, 127
    %vm252 = vcmp.ge.s32.totalorder %v251, 8
    %v253 = vsel %vm252, 1, 0
    %vm254 = vcmp.eq.s32.totalorder %v253, %v249
    %v255 = vsel %vm254, 0.125, 0.0
    %v257 = vsel %vm38, %v255, 0
    %259 = vmatpush.msra.mxu0 0.0
    %260 = vmatpush.msra.mxu0 0.0
    %261 = vmatpush.msra.mxu0 0.0
    %262 = vmatpush.msra.mxu0 0.0
    %263 = vmatpush.msra.mxu0 0.0
    %264 = vmatpush.msra.mxu0 0.0
    %265 = vmatpush.msra.mxu0 0.0
    %266 = vmatpush.msra.mxu0 0.0
    %267 = vmatpush.msra.mxu0 0.0
    %268 = vmatpush.msra.mxu0 0.0
    %269 = vmatpush.msra.mxu0 0.0
    %270 = vmatpush.msra.mxu0 0.0
    %271 = vmatpush.msra.mxu0 0.0
    %272 = vmatpush.msra.mxu0 0.0
    %273 = vmatpush.msra.mxu0 %v247
    %274 = vmatpush.msra.mxu0 %v246
    %275 = vmatmul.f32.gmra.mxu0 %v257
    %v276 = vpop.f32.mrf.mxu0
    %v277 = vadd.f32 0.0, %v276
    %278 = vdwg.mxu0
    %v279 = vperm.slane %v15, 2
    %v281 = vsel %vm102, %v277, 0
    %283 = vmatpush.msra.mxu0 0.0
    %284 = vmatpush.msra.mxu0 0.0
    %285 = vmatpush.msra.mxu0 0.0
    %286 = vmatpush.msra.mxu0 0.0
    %287 = vmatpush.msra.mxu0 0.0
    %288 = vmatpush.msra.mxu0 0.0
    %289 = vmatpush.msra.mxu0 0.0
    %290 = vmatpush.msra.mxu0 0.0
    %291 = vmatpush.msra.mxu0 0.0
    %292 = vmatpush.msra.mxu0 0.0
    %293 = vmatpush.msra.mxu0 0.0
    %294 = vmatpush.msra.mxu0 0.0
    %295 = vmatpush.msra.mxu0 %v30
    %296 = vmatpush.msra.mxu0 %v29
    %297 = vmatpush.msra.mxu0 %v28
    %298 = vmatpush.msra.mxu0 %v27
    %299 = vmatmul.f32.gmra.mxu0 %v281
    %v300 = vpop.f32.mrf.mxu0
    %v301 = vadd.f32 %v279, %v300
    %302 = vdwg.mxu0
    %v303 = vtanh.pop %v301
    %v305 = vrot.slane %v303, 1
    %306 = vrot.lane.b32.xlu0 %v305, 32
    %v307 = vpop.permute.xlu0 %306
    %v309 = vsel %vm102, %v303, %v307
    %v310 = vperm.slane %v15, 3
    %v312 = vsel %vm38, %v19, 0
    %314 = vmatpush.msra.mxu0 0.0
    %315 = vmatpush.msra.mxu0 0.0
    %316 = vmatpush.msra.mxu0 0.0
    %317 = vmatpush.msra.mxu0 0.0
    %318 = vmatpush.msra.mxu0 0.0
    %319 = vmatpush.msra.mxu0 0.0
    %320 = vmatpush.msra.mxu0 0.0
    %321 = vmatpush.msra.mxu0 0.0
    %322 = vmatpush.msra.mxu0 0.0
    %323 = vmatpush.msra.mxu0 0.0
    %324 = vmatpush.msra.mxu0 0.0
    %325 = vmatpush.msra.mxu0 0.0
    %326 = vmatpush.msra.mxu0 0.0
    %327 = vmatpush.msra.mxu0 0.0
    %328 = vmatpush.msra.mxu0 %v32
    %329 = vmatpush.msra.mxu0 %v31
    %330 = vmatmul.f32.gmra.mxu0 %v312
    %v331 = vpop.f32.mrf.mxu0
    %v332 = vadd.f32 %v310, %v331
    %333 = vdwg.mxu0
    %v334 = vmax.f32 %v332, 0.0
    %335 = vrot.lane.b32.xlu0 %v19, 112
    %v336 = vpop.permute.xlu0 %335
    %vm337 = vcmask 64512
    %v338 = vsel %vm337, %v336, 0
    %340 = vmatpush.msra.mxu0 0.0
    %341 = vmatpush.msra.mxu0 0.0
    %342 = vmatpush.msra.mxu0 0.0
    %343 = vmatpush.msra.mxu0 0.0
    %344 = vmatpush.msra.mxu0 0.0
    %345 = vmatpush.msra.mxu0 0.0
    %346 = vmatpush.msra.mxu0 0.0
    %347 = vmatpush.msra.mxu0 0.0
    %348 = vmatpush.msra.mxu0 0.0
    %349 = vmatpush.msra.mxu0 0.0
    %350 = vmatpush.msra.mxu0 0.0
    %351 = vmatpush.msra.mxu0 0.0
    %352 = vmatpush.msra.mxu0 0.0
    %353 = vmatpush.msra.mxu0 0.0
    %354 = vmatpush.msra.mxu0 0.0
    %355 = vmatpush.msra.mxu0 %v334
    %356 = vmatmul.f32.gmra.mxu0 %v338
    %v357 = vpop.f32.mrf.mxu0
    %v358 = vadd.f32 0.0, %v357
    %359 = vdwg.mxu0
    %v360 = vperm.slane %v15, 4
    %v362 = vsel %vm102, %v358, 0
    %364 = vmatpush.msra.mxu0 0.0
    %365 = vmatpush.msra.mxu0 0.0
    %366 = vmatpush.msra.mxu0 0.0
    %367 = vmatpush.msra.mxu0 0.0
    %368 = vmatpush.msra.mxu0 0.0
    %369 = vmatpush.msra.mxu0 0.0
    %370 = vmatpush.msra.mxu0 0.0
    %371 = vmatpush.msra.mxu0 0.0
    %372 = vmatpush.msra.mxu0 0.0
    %373 = vmatpush.msra.mxu0 0.0
    %374 = vmatpush.msra.mxu0 0.0
    %375 = vmatpush.msra.mxu0 0.0
    %376 = vmatpush.msra.mxu0 %v36
    %377 = vmatpush.msra.mxu0 %v35
    %378 = vmatpush.msra.mxu0 %v34
    %379 = vmatpush.msra.mxu0 %v33
    %380 = vmatmul.f32.gmra.mxu0 %v362
    %v381 = vpop.f32.mrf.mxu0
    %v382 = vadd.f32 %v360, %v381
    %383 = vdwg.mxu0
    %v384 = vadd.f32 %v382, %v334
    %v385 = vmax.f32 %v384, 0.0
    %386 = vmatpush.msra.mxu0 0.0
    %387 = vmatpush.msra.mxu0 0.0
    %388 = vmatpush.msra.mxu0 0.0
    %389 = vmatpush.msra.mxu0 0.0
    %390 = vmatpush.msra.mxu0 0.0
    %391 = vmatpush.msra.mxu0 0.0
    %392 = vmatpush.msra.mxu0 0.0
    %393 = vmatpush.msra.mxu0 0.0
    %394 = vmatpush.msra.mxu0 0.0
    %395 = vmatpush.msra.mxu0 0.0
    %396 = vmatpush.msra.mxu0 0.0
    %397 = vmatpush.msra.mxu0 0.0
    %398 = vmatpush.msra.mxu0 0.0
    %399 = vmatpush.msra.mxu0 0.0
    %400 = vmatpush.msra.mxu0 0.0
    %401 = vmatpush.msra.mxu0 %v385
    %402 = vmatmul.f32.gmra.mxu0 %v338
    %v403 = vpop.f32.mrf.mxu0
    %v404 = vadd.f32 0.0, %v403
    %405 = vdwg.mxu0
    %v407 = vsel %vm102, %v404, 0
    %409 = vmatpush.msra.mxu0 0.0
    %410 = vmatpush.msra.mxu0 0.0
    %411 = vmatpush.msra.mxu0 0.0
    %412 = vmatpush.msra.mxu0 0.0
    %413 = vmatpush.msra.mxu0 0.0
    %414 = vmatpush.msra.mxu0 0.0
    %415 = vmatpush.msra.mxu0 0.0
    %416 = vmatpush.msra.mxu0 0.0
    %417 = vmatpush.msra.mxu0 0.0
    %418 = vmatpush.msra.mxu0 0.0
    %419 = vmatpush.msra.mxu0 0.0
    %420 = vmatpush.msra.mxu0 0.0
    %421 = vmatpush.msra.mxu0 %v36
    %422 = vmatpush.msra.mxu0 %v35
    %423 = vmatpush.msra.mxu0 %v34
    %424 = vmatpush.msra.mxu0 %v33
    %425 = vmatmul.f32.gmra.mxu0 %v407
    %v426 = vpop.f32.mrf.mxu0
    %v427 = vadd.f32 %v360, %v426
    %428 = vdwg.mxu0
    %v429 = vadd.f32 %v427, %v385
    %v430 = vmax.f32 %v429, 0.0
    %431 = vmatpush.msra.mxu0 0.0
    %432 = vmatpush.msra.mxu0 0.0
    %433 = vmatpush.msra.mxu0 0.0
    %434 = vmatpush.msra.mxu0 0.0
    %435 = vmatpush.msra.mxu0 0.0
    %436 = vmatpush.msra.mxu0 0.0
    %437 = vmatpush.msra.mxu0 0.0
    %438 = vmatpush.msra.mxu0 0.0
    %439 = vmatpush.msra.mxu0 0.0
    %440 = vmatpush.msra.mxu0 0.0
    %441 = vmatpush.msra.mxu0 0.0
    %442 = vmatpush.msra.mxu0 0.0
    %443 = vmatpush.msra.mxu0 0.0
    %444 = vmatpush.msra.mxu0 0.0
    %445 = vmatpush.msra.mxu0 0.0
    %446 = vmatpush.msra.mxu0 %v430
    %447 = vmatmul.f32.gmra.mxu0 %v338
    %v448 = vpop.f32.mrf.mxu0
    %v449 = vadd.f32 0.0, %v448
    %450 = vdwg.mxu0
    %v452 = vsel %vm102, %v449, 0
    %454 = vmatpush.msra.mxu0 0.0
    %455 = vmatpush.msra.mxu0 0.0
    %456 = vmatpush.msra.mxu0 0.0
    %457 = vmatpush.msra.mxu0 0.0
    %458 = vmatpush.msra.mxu0 0.0
    %459 = vmatpush.msra.mxu0 0.0
    %460 = vmatpush.msra.mxu0 0.0
    %461 = vmatpush.msra.mxu0 0.0
    %462 = vmatpush.msra.mxu0 0.0
    %463 = vmatpush.msra.mxu0 0.0
    %464 = vmatpush.msra.mxu0 0.0
    %465 = vmatpush.msra.mxu0 0.0
    %466 = vmatpush.msra.mxu0 %v36
    %467 = vmatpush.msra.mxu0 %v35
    %468 = vmatpush.msra.mxu0 %v34
    %469 = vmatpush.msra.mxu0 %v33
    %470 = vmatmul.f32.gmra.mxu0 %v452
    %v471 = vpop.f32.mrf.mxu0
    %v472 = vadd.f32 %v360, %v471
    %473 = vdwg.mxu0
    %v474 = vadd.f32 %v472, %v430
    %v475 = vmax.f32 %v474, 0.0
    %v476 = vld [vmem:[%s1 + $0x80] sm:$0xff]
    %v477 = vld [vmem:[%s1 + $0x88] sm:$0xff]
    %v478 = vld [vmem:[%s1 + $0x90] sm:$0xff]
    %v479 = vld [vmem:[%s1 + $0x98] sm:$0xff]
    %v480 = vld [vmem:[%s1 + $0xa0] sm:$0xff]
    %v481 = vld [vmem:[%s1 + $0xa8] sm:$0xff]
    %v482 = vld [vmem:[%s1 + $0xb0] sm:$0xff]
    %v483 = vld [vmem:[%s1 + $0xb8] sm:$0xff]
    %v485 = vrot.slane %v15, 5
    %vm487 = vcmask 523264
    %v489 = vsel %vm487, %v309, 0
    %491 = vmatpush.msra.mxu0 0.0
    %492 = vmatpush.msra.mxu0 0.0
    %493 = vmatpush.msra.mxu0 0.0
    %494 = vmatpush.msra.mxu0 0.0
    %495 = vmatpush.msra.mxu0 0.0
    %496 = vmatpush.msra.mxu0 0.0
    %497 = vmatpush.msra.mxu0 0.0
    %498 = vmatpush.msra.mxu0 0.0
    %499 = vmatpush.msra.mxu0 %v483
    %500 = vmatpush.msra.mxu0 %v482
    %501 = vmatpush.msra.mxu0 %v481
    %502 = vmatpush.msra.mxu0 %v480
    %503 = vmatpush.msra.mxu0 %v479
    %504 = vmatpush.msra.mxu0 %v478
    %505 = vmatpush.msra.mxu0 %v477
    %506 = vmatpush.msra.mxu0 %v476
    %507 = vmatmul.f32.gmra.mxu0 %v489
    %v508 = vpop.f32.mrf.mxu0
    %v509 = vadd.f32 %v485, %v508
    %510 = vdwg.mxu0
    %v511 = vmax.f32 %v509, 0.0
    %v512 = vld [vmem:[%s1 + $0xc0] sm:$0xff]
    %v513 = vld [vmem:[%s1 + $0xc8] sm:$0xff]
    %v514 = vld [vmem:[%s1 + $0xd0] sm:$0xff]
    %v515 = vld [vmem:[%s1 + $0xd8] sm:$0xff]
    %v516 = vrot.slane %v15, 6
    %v519 = vsel %vm102, %v511, 0
    %521 = vmatpush.msra.mxu0 0.0
    %522 = vmatpush.msra.mxu0 0.0
    %523 = vmatpush.msra.mxu0 0.0
    %524 = vmatpush.msra.mxu0 0.0
    %525 = vmatpush.msra.mxu0 0.0
    %526 = vmatpush.msra.mxu0 0.0
    %527 = vmatpush.msra.mxu0 0.0
    %528 = vmatpush.msra.mxu0 0.0
    %529 = vmatpush.msra.mxu0 0.0
    %530 = vmatpush.msra.mxu0 0.0
    %531 = vmatpush.msra.mxu0 0.0
    %532 = vmatpush.msra.mxu0 0.0
    %533 = vmatpush.msra.mxu0 %v515
    %534 = vmatpush.msra.mxu0 %v514
    %535 = vmatpush.msra.mxu0 %v513
    %536 = vmatpush.msra.mxu0 %v512
    %537 = vmatmul.f32.gmra.mxu0 %v519
    %v538 = vpop.f32.mrf.mxu0
    %v539 = vadd.f32 %v516, %v538
    %540 = vdwg.mxu0
    %v541 = vcvt.s32.f32 %v251
    %vm542 = vcmask 122880
    %v543 = vsel %vm542, %v539, -inf
    %544 = vmax.xlane.f32.xlu0 %v543
    %v545 = vpop.xlane.xlu0 %544
    %vm546 = vcmp.ge.f32.partialorder %v539, %v545
    %v547 = vsel %vm546, %v541, 16.0
    %v548 = vsel %vm542, %v547, inf
    %549 = vmin.xlane.f32.xlu0 %v548
    %v550 = vpop.xlane.xlu0 %549
    %v551 = vld [vmem:[%s1 + $0xe0] sm:$0xff]
    %v552 = vld [vmem:[%s1 + $0xe8] sm:$0xff]
    %v553 = vld [vmem:[%s1 + $0xf0] sm:$0xff]
    %v554 = vld [vmem:[%s1 + $0xf8] sm:$0xff]
    %v555 = vld [vmem:[%s1 + $0x100] sm:$0xff]
    %v556 = vld [vmem:[%s1 + $0x108] sm:$0xff]
    %v557 = vld [vmem:[%s1 + $0x110] sm:$0xff]
    %v558 = vld [vmem:[%s1 + $0x118] sm:$0xff]
    %v560 = vsel %vm102, %v20, 0
    %562 = vmatpush.msra.mxu0 0.0
    %563 = vmatpush.msra.mxu0 0.0
    %564 = vmatpush.msra.mxu0 0.0
    %565 = vmatpush.msra.mxu0 0.0
    %566 = vmatpush.msra.mxu0 0.0
    %567 = vmatpush.msra.mxu0 0.0
    %568 = vmatpush.msra.mxu0 0.0
    %569 = vmatpush.msra.mxu0 0.0
    %570 = vmatpush.msra.mxu0 0.0
    %571 = vmatpush.msra.mxu0 0.0
    %572 = vmatpush.msra.mxu0 0.0
    %573 = vmatpush.msra.mxu0 0.0
    %574 = vmatpush.msra.mxu0 %v558
    %575 = vmatpush.msra.mxu0 %v557
    %576 = vmatpush.msra.mxu0 %v556
    %577 = vmatpush.msra.mxu0 %v555
    %578 = vmatmul.f32.gmra.mxu0 %v560
    %v579 = vpop.f32.mrf.mxu0
    %v580 = vadd.f32 0.0, %v579
    %581 = vdwg.mxu0
    %v582 = vperm.slane %v580, 0
    %v584 = vsel %vm102, %v475, 0
    %586 = vmatpush.msra.mxu0 0.0
    %587 = vmatpush.msra.mxu0 0.0
    %588 = vmatpush.msra.mxu0 0.0
    %589 = vmatpush.msra.mxu0 0.0
    %590 = vmatpush.msra.mxu0 0.0
    %591 = vmatpush.msra.mxu0 0.0
    %592 = vmatpush.msra.mxu0 0.0
    %593 = vmatpush.msra.mxu0 0.0
    %594 = vmatpush.msra.mxu0 0.0
    %595 = vmatpush.msra.mxu0 0.0
    %596 = vmatpush.msra.mxu0 0.0
    %597 = vmatpush.msra.mxu0 0.0
    %598 = vmatpush.msra.mxu0 %v554
    %599 = vmatpush.msra.mxu0 %v553
    %600 = vmatpush.msra.mxu0 %v552
    %601 = vmatpush.msra.mxu0 %v551
    %602 = vmatmul.f32.gmra.mxu0 %v584
    %v603 = vpop.f32.mrf.mxu0
    %v604 = vadd.f32 %v582, %v603
    %605 = vdwg.mxu0
    %v606 = vperm.slane %v15, 7
    %v607 = vadd.f32 %v604, %v606
    %v608 = vmax.f32 %v607, 0.0
    %v609 = vld [vmem:[%s1 + $0x120] sm:$0xff]
    %v610 = vld [vmem:[%s1 + $0x128] sm:$0xff]
    %v611 = vld [vmem:[%s1 + $0x130] sm:$0xff]
    %v612 = vld [vmem:[%s1 + $0x138] sm:$0xff]
    %v613 = vperm.slane %v16, 0
    %v615 = vsel %vm102, %v608, 0
    %617 = vmatpush.msra.mxu0 0.0
    %618 = vmatpush.msra.mxu0 0.0
    %619 = vmatpush.msra.mxu0 0.0
    %620 = vmatpush.msra.mxu0 0.0
    %621 = vmatpush.msra.mxu0 0.0
    %622 = vmatpush.msra.mxu0 0.0
    %623 = vmatpush.msra.mxu0 0.0
    %624 = vmatpush.msra.mxu0 0.0
    %625 = vmatpush.msra.mxu0 0.0
    %626 = vmatpush.msra.mxu0 0.0
    %627 = vmatpush.msra.mxu0 0.0
    %628 = vmatpush.msra.mxu0 0.0
    %629 = vmatpush.msra.mxu0 %v612
    %630 = vmatpush.msra.mxu0 %v611
    %631 = vmatpush.msra.mxu0 %v610
    %632 = vmatpush.msra.mxu0 %v609
    %633 = vmatmul.f32.gmra.mxu0 %v615
    %v634 = vpop.f32.mrf.mxu0
    %v635 = vadd.f32 %v613, %v634
    %636 = vdwg.mxu0
    %v637 = vcvt.s32.f32 %v249
    %vm638 = vcmask 7168
    %v639 = vsel %vm638, %v635, -inf
    %v640 = vrot.slane %v639, 4
    %v641 = vmax.f32 %v639, %v640
    %v642 = vrot.slane %v641, 2
    %v643 = vmax.f32 %v641, %v642
    %v644 = vrot.slane %v643, 1
    %v645 = vmax.f32 %v643, %v644
    %vm646 = vcmp.ge.f32.partialorder %v635, %v645
    %v647 = vsel %vm646, %v637, 8.0
    %v648 = vsel %vm638, %v647, inf
    %v649 = vrot.slane %v648, 4
    %v650 = vmin.f32 %v648, %v649
    %v651 = vrot.slane %v650, 2
    %v652 = vmin.f32 %v650, %v651
    %v653 = vrot.slane %v652, 1
    %v654 = vmin.f32 %v652, %v653
    %v655 = vld [vmem:[%s1 + $0x140] sm:$0xff]
    %v656 = vld [vmem:[%s1 + $0x148] sm:$0xff]
    %v657 = vld [vmem:[%s1 + $0x150] sm:$0xff]
    %v658 = vld [vmem:[%s1 + $0x158] sm:$0xff]
    %v659 = vld [vmem:[%s1 + $0x160] sm:$0xff]
    %v660 = vld [vmem:[%s1 + $0x168] sm:$0xff]
    %v661 = vld [vmem:[%s1 + $0x170] sm:$0xff]
    %v662 = vld [vmem:[%s1 + $0x178] sm:$0xff]
    %v663 = vsel %vm102, %v305, 0
    %665 = vmatpush.msra.mxu0 0.0
    %666 = vmatpush.msra.mxu0 0.0
    %667 = vmatpush.msra.mxu0 0.0
    %668 = vmatpush.msra.mxu0 0.0
    %669 = vmatpush.msra.mxu0 0.0
    %670 = vmatpush.msra.mxu0 0.0
    %671 = vmatpush.msra.mxu0 0.0
    %672 = vmatpush.msra.mxu0 0.0
    %673 = vmatpush.msra.mxu0 0.0
    %674 = vmatpush.msra.mxu0 0.0
    %675 = vmatpush.msra.mxu0 0.0
    %676 = vmatpush.msra.mxu0 0.0
    %677 = vmatpush.msra.mxu0 %v662
    %678 = vmatpush.msra.mxu0 %v661
    %679 = vmatpush.msra.mxu0 %v660
    %680 = vmatpush.msra.mxu0 %v659
    %681 = vmatmul.f32.gmra.mxu0 %v663
    %v682 = vpop.f32.mrf.mxu0
    %v683 = vadd.f32 0.0, %v682
    %684 = vdwg.mxu0
    %v685 = vperm.slane %v683, 0
    %v687 = vsel %vm102, %v246, 0
    %689 = vmatpush.msra.mxu0 0.0
    %690 = vmatpush.msra.mxu0 0.0
    %691 = vmatpush.msra.mxu0 0.0
    %692 = vmatpush.msra.mxu0 0.0
    %693 = vmatpush.msra.mxu0 0.0
    %694 = vmatpush.msra.mxu0 0.0
    %695 = vmatpush.msra.mxu0 0.0
    %696 = vmatpush.msra.mxu0 0.0
    %697 = vmatpush.msra.mxu0 0.0
    %698 = vmatpush.msra.mxu0 0.0
    %699 = vmatpush.msra.mxu0 0.0
    %700 = vmatpush.msra.mxu0 0.0
    %701 = vmatpush.msra.mxu0 %v658
    %702 = vmatpush.msra.mxu0 %v657
    %703 = vmatpush.msra.mxu0 %v656
    %704 = vmatpush.msra.mxu0 %v655
    %705 = vmatmul.f32.gmra.mxu0 %v687
    %v706 = vpop.f32.mrf.mxu0
    %v707 = vadd.f32 %v685, %v706
    %708 = vdwg.mxu0
    %v709 = vperm.slane %v16, 1
    %v710 = vadd.f32 %v707, %v709
    %v711 = vmax.f32 %v710, 0.0
    %v712 = vld [vmem:[%s1 + $0x180] sm:$0xff]
    %v713 = vld [vmem:[%s1 + $0x188] sm:$0xff]
    %v714 = vld [vmem:[%s1 + $0x190] sm:$0xff]
    %v715 = vld [vmem:[%s1 + $0x198] sm:$0xff]
    %v716 = vperm.slane %v16, 2
    %v718 = vsel %vm102, %v711, 0
    %720 = vmatpush.msra.mxu0 0.0
    %721 = vmatpush.msra.mxu0 0.0
    %722 = vmatpush.msra.mxu0 0.0
    %723 = vmatpush.msra.mxu0 0.0
    %724 = vmatpush.msra.mxu0 0.0
    %725 = vmatpush.msra.mxu0 0.0
    %726 = vmatpush.msra.mxu0 0.0
    %727 = vmatpush.msra.mxu0 0.0
    %728 = vmatpush.msra.mxu0 0.0
    %729 = vmatpush.msra.mxu0 0.0
    %730 = vmatpush.msra.mxu0 0.0
    %731 = vmatpush.msra.mxu0 0.0
    %732 = vmatpush.msra.mxu0 %v715
    %733 = vmatpush.msra.mxu0 %v714
    %734 = vmatpush.msra.mxu0 %v713
    %735 = vmatpush.msra.mxu0 %v712
    %736 = vmatmul.f32.gmra.mxu0 %v718
    %v737 = vpop.f32.mrf.mxu0
    %v738 = vadd.f32 %v716, %v737
    %739 = vdwg.mxu0
    %v740 = vsel %vm638, %v738, -inf
    %v741 = vrot.slane %v740, 4
    %v742 = vmax.f32 %v740, %v741
    %v743 = vrot.slane %v742, 2
    %v744 = vmax.f32 %v742, %v743
    %v745 = vrot.slane %v744, 1
    %v746 = vmax.f32 %v744, %v745
    %vm747 = vcmp.ge.f32.partialorder %v738, %v746
    %v748 = vsel %vm747, %v637, 8.0
    %v749 = vsel %vm638, %v748, inf
    %v750 = vrot.slane %v749, 4
    %v751 = vmin.f32 %v749, %v750
    %v752 = vrot.slane %v751, 2
    %v753 = vmin.f32 %v751, %v752
    %v754 = vrot.slane %v753, 1
    %v755 = vmin.f32 %v753, %v754
    %v756 = vld [vmem:[%s1 + $0x1a0] sm:$0xff]
    %v757 = vld [vmem:[%s1 + $0x1a8] sm:$0xff]
    %v758 = vld [vmem:[%s1 + $0x1b0] sm:$0xff]
    %v759 = vld [vmem:[%s1 + $0x1b8] sm:$0xff]
    %v760 = vld [vmem:[%s1 + $0x1c0] sm:$0xff]
    %v761 = vld [vmem:[%s1 + $0x1c8] sm:$0xff]
    %v762 = vld [vmem:[%s1 + $0x1d0] sm:$0xff]
    %v763 = vld [vmem:[%s1 + $0x1d8] sm:$0xff]
    %v764 = vld [vmem:[%s1 + $0x1e0] sm:$0xff]
    %v765 = vld [vmem:[%s1 + $0x1e8] sm:$0xff]
    %v766 = vld [vmem:[%s1 + $0x1f0] sm:$0xff]
    %v767 = vld [vmem:[%s1 + $0x1f8] sm:$0xff]
    %768 = vmatpush.msra.mxu0 0.0
    %769 = vmatpush.msra.mxu0 0.0
    %770 = vmatpush.msra.mxu0 0.0
    %771 = vmatpush.msra.mxu0 0.0
    %772 = vmatpush.msra.mxu0 0.0
    %773 = vmatpush.msra.mxu0 0.0
    %774 = vmatpush.msra.mxu0 0.0
    %775 = vmatpush.msra.mxu0 0.0
    %776 = vmatpush.msra.mxu0 %v767
    %777 = vmatpush.msra.mxu0 %v766
    %778 = vmatpush.msra.mxu0 %v765
    %779 = vmatpush.msra.mxu0 %v764
    %780 = vmatpush.msra.mxu0 %v763
    %781 = vmatpush.msra.mxu0 %v762
    %782 = vmatpush.msra.mxu0 %v761
    %783 = vmatpush.msra.mxu0 %v760
    %784 = vmatmul.f32.gmra.mxu0 %v489
    %v785 = vpop.f32.mrf.mxu0
    %v786 = vadd.f32 0.0, %v785
    %787 = vdwg.mxu0
    %v788 = vperm.slane %v786, 0
    %v790 = vsel %vm102, %v247, 0
    %792 = vmatpush.msra.mxu0 0.0
    %793 = vmatpush.msra.mxu0 0.0
    %794 = vmatpush.msra.mxu0 0.0
    %795 = vmatpush.msra.mxu0 0.0
    %796 = vmatpush.msra.mxu0 0.0
    %797 = vmatpush.msra.mxu0 0.0
    %798 = vmatpush.msra.mxu0 0.0
    %799 = vmatpush.msra.mxu0 0.0
    %800 = vmatpush.msra.mxu0 0.0
    %801 = vmatpush.msra.mxu0 0.0
    %802 = vmatpush.msra.mxu0 0.0
    %803 = vmatpush.msra.mxu0 0.0
    %804 = vmatpush.msra.mxu0 %v759
    %805 = vmatpush.msra.mxu0 %v758
    %806 = vmatpush.msra.mxu0 %v757
    %807 = vmatpush.msra.mxu0 %v756
    %808 = vmatmul.f32.gmra.mxu0 %v790
    %v809 = vpop.f32.mrf.mxu0
    %v810 = vadd.f32 %v788, %v809
    %811 = vdwg.mxu0
    %v812 = vperm.slane %v16, 3
    %v813 = vadd.f32 %v810, %v812
    %v814 = vmax.f32 %v813, 0.0
    %v815 = vld [vmem:[%s1 + $0x200] sm:$0xff]
    %v816 = vld [vmem:[%s1 + $0x208] sm:$0xff]
    %v817 = vld [vmem:[%s1 + $0x210] sm:$0xff]
    %v818 = vld [vmem:[%s1 + $0x218] sm:$0xff]
    %v819 = vperm.slane %v16, 4
    %v821 = vsel %vm102, %v814, 0
    %823 = vmatpush.msra.mxu0 0.0
    %824 = vmatpush.msra.mxu0 0.0
    %825 = vmatpush.msra.mxu0 0.0
    %826 = vmatpush.msra.mxu0 0.0
    %827 = vmatpush.msra.mxu0 0.0
    %828 = vmatpush.msra.mxu0 0.0
    %829 = vmatpush.msra.mxu0 0.0
    %830 = vmatpush.msra.mxu0 0.0
    %831 = vmatpush.msra.mxu0 0.0
    %832 = vmatpush.msra.mxu0 0.0
    %833 = vmatpush.msra.mxu0 0.0
    %834 = vmatpush.msra.mxu0 0.0
    %835 = vmatpush.msra.mxu0 %v818
    %836 = vmatpush.msra.mxu0 %v817
    %837 = vmatpush.msra.mxu0 %v816
    %838 = vmatpush.msra.mxu0 %v815
    %839 = vmatmul.f32.gmra.mxu0 %v821
    %v840 = vpop.f32.mrf.mxu0
    %v841 = vadd.f32 %v819, %v840
    %842 = vdwg.mxu0
    %v843 = vsel %vm638, %v841, -inf
    %v844 = vrot.slane %v843, 4
    %v845 = vmax.f32 %v843, %v844
    %v846 = vrot.slane %v845, 2
    %v847 = vmax.f32 %v845, %v846
    %v848 = vrot.slane %v847, 1
    %v849 = vmax.f32 %v847, %v848
    %vm850 = vcmp.ge.f32.partialorder %v841, %v849
    %v851 = vsel %vm850, %v637, 8.0
    %v852 = vsel %vm638, %v851, inf
    %v853 = vrot.slane %v852, 4
    %v854 = vmin.f32 %v852, %v853
    %v855 = vrot.slane %v854, 2
    %v856 = vmin.f32 %v854, %v855
    %v857 = vrot.slane %v856, 1
    %v858 = vmin.f32 %v856, %v857
    %v859 = vcvt.f32.s32.to.zero.pseudo %v755
    %vm860 = vcmp.eq.s32.totalorder %v249, %v859
    %v861 = vsel %vm860, 1, 0
    %862 = vset.pattern.permute.xlu0 0
    %863 = vperm.xlu0 %862, %v861
    %v864 = vpop.permute.xlu0 %863
    %vm865 = vcmp.eq.s32.totalorder %v864, 1
    %v866 = vsel %vm865, %v246, 0.0
    %v867 = vsel %vm102, %v866, 0.0
    %v868 = vrot.slane %v867, 4
    %v869 = vadd.f32 %v867, %v868
    %v870 = vrot.slane %v869, 2
    %v871 = vadd.f32 %v869, %v870
    %v872 = vrot.slane %v871, 1
    %v873 = vadd.f32 %v871, %v872
    %v874 = vcvt.f32.s32.to.zero.pseudo %v858
    %vm875 = vcmp.eq.s32.totalorder %v249, %v874
    %v876 = vsel %vm875, 1, 0
    %877 = vset.pattern.permute.xlu0 0
    %878 = vperm.xlu0 %877, %v876
    %v879 = vpop.permute.xlu0 %878
    %vm880 = vcmp.eq.s32.totalorder %v879, 1
    %v881 = vsel %vm880, %v247, 0.0
    %v882 = vsel %vm102, %v881, 0.0
    %v883 = vrot.slane %v882, 4
    %v884 = vadd.f32 %v882, %v883
    %v885 = vrot.slane %v884, 2
    %v886 = vadd.f32 %v884, %v885
    %v887 = vrot.slane %v886, 1
    %v888 = vadd.f32 %v886, %v887
    %v889 = vld [vmem:[%s1 + $0x220] sm:$0xff]
    %v890 = vld [vmem:[%s1 + $0x228] sm:$0xff]
    %v891 = vld [vmem:[%s1 + $0x230] sm:$0xff]
    %v892 = vld [vmem:[%s1 + $0x238] sm:$0xff]
    %v893 = vld [vmem:[%s1 + $0x240] sm:$0xff]
    %v894 = vld [vmem:[%s1 + $0x248] sm:$0xff]
    %v895 = vld [vmem:[%s1 + $0x250] sm:$0xff]
    %v896 = vld [vmem:[%s1 + $0x258] sm:$0xff]
    %v898 = vsel %vm102, %v888, 0
    %900 = vmatpush.msra.mxu0 0.0
    %901 = vmatpush.msra.mxu0 0.0
    %902 = vmatpush.msra.mxu0 0.0
    %903 = vmatpush.msra.mxu0 0.0
    %904 = vmatpush.msra.mxu0 0.0
    %905 = vmatpush.msra.mxu0 0.0
    %906 = vmatpush.msra.mxu0 0.0
    %907 = vmatpush.msra.mxu0 0.0
    %908 = vmatpush.msra.mxu0 0.0
    %909 = vmatpush.msra.mxu0 0.0
    %910 = vmatpush.msra.mxu0 0.0
    %911 = vmatpush.msra.mxu0 0.0
    %912 = vmatpush.msra.mxu0 %v896
    %913 = vmatpush.msra.mxu0 %v895
    %914 = vmatpush.msra.mxu0 %v894
    %915 = vmatpush.msra.mxu0 %v893
    %916 = vmatmul.f32.gmra.mxu0 %v898
    %v917 = vpop.f32.mrf.mxu0
    %v918 = vadd.f32 0.0, %v917
    %919 = vdwg.mxu0
    %v921 = vsel %vm102, %v873, 0
    %923 = vmatpush.msra.mxu0 0.0
    %924 = vmatpush.msra.mxu0 0.0
    %925 = vmatpush.msra.mxu0 0.0
    %926 = vmatpush.msra.mxu0 0.0
    %927 = vmatpush.msra.mxu0 0.0
    %928 = vmatpush.msra.mxu0 0.0
    %929 = vmatpush.msra.mxu0 0.0
    %930 = vmatpush.msra.mxu0 0.0
    %931 = vmatpush.msra.mxu0 0.0
    %932 = vmatpush.msra.mxu0 0.0
    %933 = vmatpush.msra.mxu0 0.0
    %934 = vmatpush.msra.mxu0 0.0
    %935 = vmatpush.msra.mxu0 %v892
    %936 = vmatpush.msra.mxu0 %v891
    %937 = vmatpush.msra.mxu0 %v890
    %938 = vmatpush.msra.mxu0 %v889
    %939 = vmatmul.f32.gmra.mxu0 %v921
    %v940 = vpop.f32.mrf.mxu0
    %v941 = vadd.f32 %v918, %v940
    %942 = vdwg.mxu0
    %v943 = vld [vmem:[%s1 + $0x260] sm:$0xff]
    %v944 = vld [vmem:[%s1 + $0x268] sm:$0xff]
    %v945 = vld [vmem:[%s1 + $0x270] sm:$0xff]
    %v946 = vld [vmem:[%s1 + $0x278] sm:$0xff]
    %947 = vmatpush.msra.mxu0 0.0
    %948 = vmatpush.msra.mxu0 0.0
    %949 = vmatpush.msra.mxu0 0.0
    %950 = vmatpush.msra.mxu0 0.0
    %951 = vmatpush.msra.mxu0 0.0
    %952 = vmatpush.msra.mxu0 0.0
    %953 = vmatpush.msra.mxu0 0.0
    %954 = vmatpush.msra.mxu0 0.0
    %955 = vmatpush.msra.mxu0 0.0
    %956 = vmatpush.msra.mxu0 0.0
    %957 = vmatpush.msra.mxu0 0.0
    %958 = vmatpush.msra.mxu0 0.0
    %959 = vmatpush.msra.mxu0 %v946
    %960 = vmatpush.msra.mxu0 %v945
    %961 = vmatpush.msra.mxu0 %v944
    %962 = vmatpush.msra.mxu0 %v943
    %963 = vmatmul.f32.gmra.mxu0 %v663
    %v964 = vpop.f32.mrf.mxu0
    %v965 = vadd.f32 0.0, %v964
    %966 = vdwg.mxu0
    %v967 = vadd.f32 %v941, %v965
    %v969 = vrot.slane %v16, 5
    %v971 = vadd.f32 %v967, %v969
    %v972 = vmax.f32 %v971, 0.0
    %v973 = vld [vmem:[%s1 + $0x280] sm:$0xff]
    %v974 = vld [vmem:[%s1 + $0x288] sm:$0xff]
    %v975 = vld [vmem:[%s1 + $0x290] sm:$0xff]
    %v976 = vld [vmem:[%s1 + $0x298] sm:$0xff]
    %v977 = vrot.slane %v16, 6
    %v980 = vsel %vm102, %v972, 0
    %982 = vmatpush.msra.mxu0 0.0
    %983 = vmatpush.msra.mxu0 0.0
    %984 = vmatpush.msra.mxu0 0.0
    %985 = vmatpush.msra.mxu0 0.0
    %986 = vmatpush.msra.mxu0 0.0
    %987 = vmatpush.msra.mxu0 0.0
    %988 = vmatpush.msra.mxu0 0.0
    %989 = vmatpush.msra.mxu0 0.0
    %990 = vmatpush.msra.mxu0 0.0
    %991 = vmatpush.msra.mxu0 0.0
    %992 = vmatpush.msra.mxu0 0.0
    %993 = vmatpush.msra.mxu0 0.0
    %994 = vmatpush.msra.mxu0 %v976
    %995 = vmatpush.msra.mxu0 %v975
    %996 = vmatpush.msra.mxu0 %v974
    %997 = vmatpush.msra.mxu0 %v973
    %998 = vmatmul.f32.gmra.mxu0 %v980
    %v999 = vpop.f32.mrf.mxu0
    %v1000 = vadd.f32 %v977, %v999
    %1001 = vdwg.mxu0
    %vm1002 = vcmask 24576
    %v1003 = vsel %vm1002, %v1000, -inf
    %1004 = vmax.xlane.f32.xlu0 %v1003
    %v1005 = vpop.xlane.xlu0 %1004
    %vm1006 = vcmp.ge.f32.partialorder %v1000, %v1005
    %v1007 = vsel %vm1006, %v541, 4.0
    %v1008 = vsel %vm1002, %v1007, inf
    %1009 = vmin.xlane.f32.xlu0 %v1008
    %v1010 = vpop.xlane.xlu0 %1009
    %vm1011 = vcmask 254976
    %1012 = vst.msk [vmem:[#allocation4] sm:$0x3] %vm1011, %v303
    %vm1013 = vcmp.eq.s32.totalorder %v249, 0
    %v1014 = vperm.slane %v550, 0
    %v1015 = vsel %vm1013, %v1014, 0.0
    %vm1016 = vcmp.eq.s32.totalorder %v249, 1
    %1018 = vset.pattern.permute.xlu0 0
    %1019 = vperm.xlu0 %1018, %v654
    %v1020 = vpop.permute.xlu0 %1019
    %v1022 = vsel %vm1016, %v1020, %v1015
    %vm1023 = vcmp.eq.s32.totalorder %v249, 2
    %1025 = vset.pattern.permute.xlu0 0
    %1026 = vperm.xlu0 %1025, %v755
    %v1027 = vpop.permute.xlu0 %1026
    %v1029 = vsel %vm1023, %v1027, %v1022
    %vm1030 = vcmp.eq.s32.totalorder %v249, 3
    %1032 = vset.pattern.permute.xlu0 0
    %1033 = vperm.xlu0 %1032, %v858
    %v1034 = vpop.permute.xlu0 %1033
    %v1036 = vsel %vm1030, %v1034, %v1029
    %vm1037 = vcmp.eq.s32.totalorder %v249, 4
    %v1038 = vperm.slane %v1010, 0
    %v1039 = vsel %vm1037, %v1038, %v1036
    %v1040 = vcvt.f32.s32.to.zero.pseudo %v1039
    %1041 = vst [vmem:[#allocation2] sm:$0xff] %v1040
    // Predicated region
    $region10: #{molgena_infer.1} parent=1 // pred_check
      _
    $region11: #{molgena_infer.1} parent=1 // pred_check_branch
      %1043 = sbr.rel (0) target = $region13
    $region12: #{molgena_infer.1} parent=1 // pred_region
      %1045 = vsyncadd [#allocation3], 0
      %s1047 = sshll.u32 [#allocation2], 4
      %s1048 = int_to_ptr.vmem [resolvable:$true] %s1047
      %s1049 = sshll.u32 %s2, 4
      %s1050 = int_to_ptr.hbm [resolvable:$true] %s1049
      %1052 = dma.vmem_to_hbm [thread:$0]  %s1048, 128, %s1050, [#allocation3]
    $region13: #{molgena_infer.1} parent=1 // pred_fallthru
      _
    // Predicated region
    $region14: #{molgena_infer.1} parent=1 // pred_check
      _
    $region15: #{molgena_infer.1} parent=1 // pred_check_branch
      %1054 = sbr.rel (0) target = $region17
    $region16: #{molgena_infer.1} parent=1 // pred_region
      %1056 = vsyncadd [#allocation5], 0
      %s1058 = sshll.u32 [#allocation4], 4
      %s1059 = int_to_ptr.vmem [resolvable:$true] %s1058
      %s1060 = sshll.u32 %s3, 4
      %s1061 = int_to_ptr.hbm [resolvable:$true] %s1060
      %1063 = dma.vmem_to_hbm [thread:$0]  %s1059, 32, %s1061, [#allocation5]
    $region17: #{molgena_infer.1} parent=1 // pred_fallthru
      _
    // Predicated region
    $region18: #{molgena_infer.1} parent=1 // pred_check
      _
    $region19: #{molgena_infer.1} parent=1 // pred_check_branch
      %1065 = sbr.rel (0) target = $region21
    $region20: #{molgena_infer.1} parent=1 // pred_region
      %1067 = dma.done [#allocation3], 128
    $region21: #{molgena_infer.1} parent=1 // pred_fallthru
      _
    // Predicated region
    $region22: #{molgena_infer.1} parent=1 // pred_check
      _
    $region23: #{molgena_infer.1} parent=1 // pred_check_branch
      %1069 = sbr.rel (0) target = $region25
    $region24: #{molgena_infer.1} parent=1 // pred_region
      %1071 = dma.done [#allocation5], 32
    $region25: #{molgena_infer.1} parent=1 // pred_fallthru
      _
    %1072 = vsyncpa [#allocation3], 1
    %1073 = vsyncpa [#allocation5], 1

</llo_original>
